<compile_context>
chip_gen: v7x
topology: tpu7x:2x2x1
jax: 0.10.0
libtpu: 0.0.40
codegen_flags: <defaults>
</compile_context>

<pallas_src>
import functools

import jax
import jax.numpy as jnp
from jax.experimental import pallas as pl
from jax.experimental.pallas import tpu as pltpu


# ------------------------------------------------------------------ tiling / VMEM planning

_VMEM_LIMIT_BYTES = 32 * 1024 * 1024      # explicit scoped-VMEM limit (safe on v5e/v6e/v7x)
_VMEM_BUDGET = 20 * 1024 * 1024           # what we allow our own tiles to use


def _plan_m(m, k, cout):
    """Largest multiple-of-128 M-tile fitting the VMEM budget, then shrunk (when M allows)
    so the 'parallel' grid has >= 2 steps for dual-TensorCore chips (v7x)."""
    tm = 128
    for cand in (2048, 1024, 512, 256, 128):
        # double-buffered bf16 patch tile + double-buffered f32 out/pos tiles + resident weight
        need = 2 * cand * k * 2 + 4 * cand * cout * 4 + cout * k * 2
        if need <= _VMEM_BUDGET:
            tm = cand
            break
    while tm > 128 and pl.cdiv(m, tm) < 2:
        tm //= 2
    m_pad = pl.cdiv(m, tm) * tm
    return tm, m_pad


# ------------------------------------------------------------------ Pallas kernels

def _conv_kernel(w_ref, b_ref, a_ref, o_ref):
    # w: (Cout, K) bf16, b: (Cout, 1) f32, a: (K, tm) bf16 -> o: (Cout, tm) f32 (lane-dense)
    o_ref[...] = (
        jnp.dot(w_ref[...], a_ref[...], preferred_element_type=jnp.float32)
        + b_ref[...]
    )


def _conv_vim_kernel(w_ref, b_ref, rmsw_ref, a_ref, pos_ref, o_ref, *, eps):
    # Conv3d (im2col matmul) fused with the Vim_Block epilogue.
    # Tokens are columns: channels on sublanes (axis 0), tokens on lanes (axis 1).
    conv = (
        jnp.dot(w_ref[...], a_ref[...], preferred_element_type=jnp.float32)
        + b_ref[...]
    )                                                   # (Cout, tm) == hidden_states_resdual
    pos = pos_ref[...]                                  # (Cout, tm)
    h = conv + pos                                      # hidden_states + pos_embed
    # fused_add_norm (residual=None, prenorm=True): normed = RMSNorm(h), residual = h (fp32)
    rstd = jax.lax.rsqrt(jnp.mean(h * h, axis=0, keepdims=True) + eps)
    normed = h * rstd * rmsw_ref[...]
    # TODO(synk): Mamba_FFT mixer not defined in the reference -> identity here.
    mixed = normed
    # + pos_embed, + original token residual
    o_ref[...] = mixed + pos + conv


# ------------------------------------------------------------------ im2col (channels-first, (K, M))

def _preact_patches(x, p, k, stride):
    """x: (C, B, D, H, W) f32. Returns bf16 patches (K, M) with K = k^3*C (tap-major,
    channel-minor) and M = B*Do*Ho*Wo, plus the output spatial shape."""
    c = x.shape[0]
    eps = 1e-5
    scale = (p["bn_gamma"] / jnp.sqrt(p["bn_var"] + eps)).reshape(c, 1, 1, 1, 1)
    shift = (p["bn_beta"] - p["bn_mean"] * (p["bn_gamma"] / jnp.sqrt(p["bn_var"] + eps))
             ).reshape(c, 1, 1, 1, 1)
    # BN + ReLU in f32 on the VPU (XLA fuses into the gather); bf16 only for the MXU operand.
    y = jnp.maximum(x * scale + shift, 0.0).astype(jnp.bfloat16)

    padding = k - stride
    if padding % 2 != 0:
        lo, hi = padding % 2, padding - padding % 2      # matches ConstantPad3d(tuple) in the ref
    else:
        lo = hi = padding // 2
    yp = jnp.pad(y, ((0, 0), (0, 0), (lo, hi), (lo, hi), (lo, hi)))

    _, b, dp, hp, wp = yp.shape
    do = (dp - k) // stride + 1
    ho = (hp - k) // stride + 1
    wo = (wp - k) // stride + 1
    taps = []
    for kd in range(k):
        for kh in range(k):
            for kw in range(k):
                taps.append(yp[:, :,
                                kd:kd + stride * do:stride,
                                kh:kh + stride * ho:stride,
                                kw:kw + stride * wo:stride])
    p_stack = jnp.stack(taps, axis=0)                    # (k^3, C, B, Do, Ho, Wo)
    kdim = k ** 3 * c
    m = b * do * ho * wo
    return p_stack.reshape(kdim, m), (b, do, ho, wo)


# ------------------------------------------------------------------ ConvBlock (+ optional fused Vim)

def conv_block_preact(x, p, k, stride, vim=None):
    """Preactivation ConvBlock (BN -> ReLU -> pad -> Conv3d), optionally fused with a Vim_Block.
    x: (Cin, B, D, H, W) f32  ->  (Cout, B, Do, Ho, Wo) f32."""
    patches, (b, do, ho, wo) = _preact_patches(x, p, k, stride)
    kdim, m = patches.shape
    cout = p["w"].shape[0]

    # PyTorch conv weight (Cout, Cin, kd, kh, kw) -> (Cout, kd, kh, kw, Cin) -> (Cout, K)
    wmat = jnp.transpose(p["w"], (0, 2, 3, 4, 1)).reshape(cout, kdim).astype(jnp.bfloat16)
    bias = p["b"].reshape(cout, 1).astype(jnp.float32)

    tm, m_pad = _plan_m(m, kdim, cout)
    if m_pad != m:
        patches = jnp.pad(patches, ((0, 0), (0, m_pad - m)))
    grid = (m_pad // tm,)

    cparams = pltpu.CompilerParams(
        dimension_semantics=("parallel",),
        vmem_limit_bytes=_VMEM_LIMIT_BYTES,
    )

    if vim is None:
        cost = pl.CostEstimate(
            flops=2 * m_pad * kdim * cout,
            transcendentals=0,
            bytes_accessed=m_pad * kdim * 2 + cout * kdim * 2 + cout * 4 + cout * m_pad * 4,
        )
        out = pl.pallas_call(
            _conv_kernel,
            out_shape=jax.ShapeDtypeStruct((cout, m_pad), jnp.float32),
            grid=grid,
            in_specs=[
                pl.BlockSpec((cout, kdim), lambda i: (0, 0)),   # weight, resident
                pl.BlockSpec((cout, 1), lambda i: (0, 0)),      # bias
                pl.BlockSpec((kdim, tm), lambda i: (0, i)),     # patches tile
            ],
            out_specs=pl.BlockSpec((cout, tm), lambda i: (0, i)),
            compiler_params=cparams,
            cost_estimate=cost,
        )(wmat, bias, patches)
    else:
        pos_cl, rms_w = vim                                     # pos: (Cout, L), rms_w: (Cout,)
        pos_cm = jnp.tile(pos_cl, (1, b)).astype(jnp.float32)   # (Cout, M) batch-major tokens
        if m_pad != m:
            pos_cm = jnp.pad(pos_cm, ((0, 0), (0, m_pad - m)))
        rms_w = rms_w.reshape(cout, 1).astype(jnp.float32)
        cost = pl.CostEstimate(
            flops=2 * m_pad * kdim * cout + 10 * m_pad * cout,
            transcendentals=m_pad,
            bytes_accessed=(m_pad * kdim * 2 + cout * kdim * 2 + 2 * cout * 4
                            + 2 * cout * m_pad * 4),
        )
        out = pl.pallas_call(
            functools.partial(_conv_vim_kernel, eps=1e-5),
            out_shape=jax.ShapeDtypeStruct((cout, m_pad), jnp.float32),
            grid=grid,
            in_specs=[
                pl.BlockSpec((cout, kdim), lambda i: (0, 0)),   # weight, resident
                pl.BlockSpec((cout, 1), lambda i: (0, 0)),      # bias
                pl.BlockSpec((cout, 1), lambda i: (0, 0)),      # RMSNorm weight
                pl.BlockSpec((kdim, tm), lambda i: (0, i)),     # patches tile
                pl.BlockSpec((cout, tm), lambda i: (0, i)),     # pos-embed tile
            ],
            out_specs=pl.BlockSpec((cout, tm), lambda i: (0, i)),
            compiler_params=cparams,
            cost_estimate=cost,
        )(wmat, bias, rms_w, patches, pos_cm)

    if m_pad != m:
        out = out[:, :m]
    return out.reshape(cout, b, do, ho, wo)


# ------------------------------------------------------------------ full module forward

def downsample_with_dfs_forward(x_ncdhw, params, pos_embed, ds_kernel, units):
    # NCDHW -> (C, B, D, H, W) channels-first working layout
    x = jnp.transpose(x_ncdhw, (1, 0, 2, 3, 4)).astype(jnp.float32)

    # downsample (preactivation ConvBlock, stride 2)
    ds = conv_block_preact(x, params["downsample"], k=ds_kernel, stride=2)
    c0, b, do, ho, wo = ds.shape
    growth = params["dfs"][0]["w"].shape[0]
    c_total = c0 + units * growth

    # pos embed (1, L, C) -> (C, L)
    pos_cl = jnp.transpose(pos_embed[0]).astype(jnp.float32)

    # DenseFeatureStack: preallocated channel buffer, each unit writes its growth slice
    stack = jnp.zeros((c_total, b, do, ho, wo), jnp.float32)
    stack = stack.at[:c0].set(ds)
    c_in = c0
    for i in range(units):
        inputs = stack[:c_in]
        out = conv_block_preact(inputs, params["dfs"][i], k=3, stride=1,
                                vim=(pos_cl, params["vim_rms_w"][i]))
        stack = stack.at[c_in:c_in + growth].set(out)
        c_in += growth

    # skip conv
    x_skip = conv_block_preact(stack, params["skip"], k=3, stride=1)

    # back to NCDHW
    x_out = jnp.transpose(stack, (1, 0, 2, 3, 4))
    x_skip = jnp.transpose(x_skip, (1, 0, 2, 3, 4))
    return x_out, x_skip


# ------------------------------------------------------------------ deterministic init

def init_conv_block_params(key, cin, cout, k):
    k1, k2, k3, k4 = jax.random.split(key, 4)
    return dict(
        bn_gamma=1.0 + 0.1 * jax.random.normal(k1, (cin,), jnp.float32),
        bn_beta=0.1 * jax.random.normal(k2, (cin,), jnp.float32),
        bn_mean=jnp.zeros((cin,), jnp.float32),    # inference-mode running stats
        bn_var=jnp.ones((cin,), jnp.float32),
        w=0.05 * jax.random.normal(k3, (cout, cin, k, k, k), jnp.float32),
        b=0.05 * jax.random.normal(k4, (cout,), jnp.float32),
    )


# ------------------------------------------------------------------ main

if __name__ == "__main__":
    key = jax.random.PRNGKey(0)

    B, in_channels, S = 2, 4, 8
    downsample_channels = 8
    skip_channels = 16
    ds_kernel = 2          # downsample ConvBlock kernel_size (stride 2 -> padding 0)
    units = 2
    growth_rate = 8
    S_ds = S // 2
    n_tokens = S_ds ** 3   # 64 tokens after downsample

    keys = jax.random.split(key, 8 + 2 * units)
    params = {
        "downsample": init_conv_block_params(keys[0], in_channels, downsample_channels, ds_kernel),
        "dfs": [
            init_conv_block_params(keys[1 + i], downsample_channels + i * growth_rate,
                                   growth_rate, 3)
            for i in range(units)
        ],
        "vim_rms_w": [
            1.0 + 0.05 * jax.random.normal(keys[1 + units + i], (growth_rate,), jnp.float32)
            for i in range(units)
        ],
        "skip": init_conv_block_params(keys[1 + 2 * units],
                                       downsample_channels + units * growth_rate,
                                       skip_channels, 3),
    }

    x = jax.random.normal(keys[-2], (B, in_channels, S, S, S), jnp.float32)          # NCDHW
    learnable_positional_embed = 0.02 * jax.random.normal(
        keys[-1], (1, n_tokens, growth_rate), jnp.float32
    )

    fwd = jax.jit(
        functools.partial(downsample_with_dfs_forward, ds_kernel=ds_kernel, units=units)
    )
    x_out, x_skip = fwd(x, params, learnable_positional_embed)
    jax.block_until_ready((x_out, x_skip))

    assert x_out.shape == (B, downsample_channels + units * growth_rate, S_ds, S_ds, S_ds)
    assert x_skip.shape == (B, skip_channels, S_ds, S_ds, S_ds)
    assert bool(jnp.all(jnp.isfinite(x_out))) and bool(jnp.all(jnp.isfinite(x_skip)))
    print("KERNEL_OK")
</pallas_src>

<mosaic_0001>
module attributes {stable_mosaic.version = 11 : i64} {
  func.func @_conv_kernel(%arg0: i32, %arg1: memref<8x32xbf16, #tpu.memory_space<vmem>>, %arg2: memref<8x1xf32, #tpu.memory_space<vmem>>, %arg3: memref<32x128xbf16, #tpu.memory_space<vmem>>, %arg4: memref<8x128xf32, #tpu.memory_space<vmem>>) attributes {dimension_semantics = [#tpu.dimension_semantics<parallel>], iteration_bounds = array<i64: 1>, scalar_prefetch = 0 : i64, scratch_operands = 0 : i64, tpu.core_type = #tpu.core_type<tc>, window_params = [{pipeline_mode = #tpu.pipeline_mode<synchronous>, transform_indices = @transform_0, window_bounds = array<i64: 8, 32>}, {pipeline_mode = #tpu.pipeline_mode<synchronous>, transform_indices = @transform_1, window_bounds = array<i64: 8, 1>}, {transform_indices = @transform_2, window_bounds = array<i64: 32, 128>}, {transform_indices = @transform_3, window_bounds = array<i64: 8, 128>}]} {
    %c0 = arith.constant 0 : index
    %c0_0 = arith.constant 0 : index
    %0 = vector.load %arg1[%c0, %c0_0] : memref<8x32xbf16, #tpu.memory_space<vmem>>, vector<8x32xbf16>
    %c0_1 = arith.constant 0 : index
    %c0_2 = arith.constant 0 : index
    %1 = vector.load %arg3[%c0_1, %c0_2] : memref<32x128xbf16, #tpu.memory_space<vmem>>, vector<32x128xbf16>
    %cst = arith.constant dense<0.000000e+00> : vector<8x128xf32>
    %2 = tpu.matmul %0, %1, %cst {dimension_numbers = #tpu.dot_dimension_numbers<[1], [0], [0], [1], [0, 0, 1, 1], [], []>} : vector<8x32xbf16>, vector<32x128xbf16>, vector<8x128xf32> -> vector<8x128xf32>
    %c0_3 = arith.constant 0 : index
    %c0_4 = arith.constant 0 : index
    %3 = vector.load %arg2[%c0_3, %c0_4] : memref<8x1xf32, #tpu.memory_space<vmem>>, vector<8x1xf32>
    %4 = vector.broadcast %3 : vector<8x1xf32> to vector<8x128xf32>
    %5 = arith.addf %2, %4 : vector<8x128xf32>
    %c0_5 = arith.constant 0 : index
    %c0_6 = arith.constant 0 : index
    %6 = vector.load %arg4[%c0_5, %c0_6] : memref<8x128xf32, #tpu.memory_space<vmem>>, vector<8x128xf32>
    tpu.vector_store %arg4[%c0_5, %c0_6], %5 {strides = array<i32>} : memref<8x128xf32, #tpu.memory_space<vmem>>, vector<8x128xf32>,
    return
  }
  func.func @transform_0(%arg0: i32) -> (i32, i32) {
    %c0_i32 = arith.constant 0 : i32
    %c0_i32_0 = arith.constant 0 : i32
    %c0_i32_1 = arith.constant 0 : i32
    return %c0_i32, %c0_i32_0 : i32, i32
  }
  func.func @transform_1(%arg0: i32) -> (i32, i32) {
    %c0_i32 = arith.constant 0 : i32
    %c0_i32_0 = arith.constant 0 : i32
    %c0_i32_1 = arith.constant 0 : i32
    return %c0_i32, %c0_i32_0 : i32, i32
  }
  func.func @transform_2(%arg0: i32) -> (i32, i32) {
    %c0_i32 = arith.constant 0 : i32
    %c0_i32_0 = arith.constant 0 : i32
    return %c0_i32, %arg0 : i32, i32
  }
  func.func @transform_3(%arg0: i32) -> (i32, i32) {
    %c0_i32 = arith.constant 0 : i32
    %c0_i32_0 = arith.constant 0 : i32
    return %c0_i32, %arg0 : i32, i32
  }
}

module attributes {stable_mosaic.version = 11 : i64} {
  func.func @_conv_vim_kernel(%arg0: i32, %arg1: memref<8x216xbf16, #tpu.memory_space<vmem>>, %arg2: memref<8x1xf32, #tpu.memory_space<vmem>>, %arg3: memref<8x1xf32, #tpu.memory_space<vmem>>, %arg4: memref<216x128xbf16, #tpu.memory_space<vmem>>, %arg5: memref<8x128xf32, #tpu.memory_space<vmem>>, %arg6: memref<8x128xf32, #tpu.memory_space<vmem>>) attributes {dimension_semantics = [#tpu.dimension_semantics<parallel>], iteration_bounds = array<i64: 1>, scalar_prefetch = 0 : i64, scratch_operands = 0 : i64, tpu.core_type = #tpu.core_type<tc>, window_params = [{pipeline_mode = #tpu.pipeline_mode<synchronous>, transform_indices = @transform_0, window_bounds = array<i64: 8, 216>}, {pipeline_mode = #tpu.pipeline_mode<synchronous>, transform_indices = @transform_1, window_bounds = array<i64: 8, 1>}, {pipeline_mode = #tpu.pipeline_mode<synchronous>, transform_indices = @transform_2, window_bounds = array<i64: 8, 1>}, {transform_indices = @transform_3, window_bounds = array<i64: 216, 128>}, {transform_indices = @transform_4, window_bounds = array<i64: 8, 128>}, {transform_indices = @transform_5, window_bounds = array<i64: 8, 128>}]} {
    %c0 = arith.constant 0 : index
    %c0_0 = arith.constant 0 : index
    %0 = vector.load %arg1[%c0, %c0_0] : memref<8x216xbf16, #tpu.memory_space<vmem>>, vector<8x216xbf16>
    %c0_1 = arith.constant 0 : index
    %c0_2 = arith.constant 0 : index
    %1 = vector.load %arg4[%c0_1, %c0_2] : memref<216x128xbf16, #tpu.memory_space<vmem>>, vector<216x128xbf16>
    %cst = arith.constant dense<0.000000e+00> : vector<8x128xf32>
    %2 = tpu.matmul %0, %1, %cst {dimension_numbers = #tpu.dot_dimension_numbers<[1], [0], [0], [1], [0, 0, 1, 1], [], []>} : vector<8x216xbf16>, vector<216x128xbf16>, vector<8x128xf32> -> vector<8x128xf32>
    %c0_3 = arith.constant 0 : index
    %c0_4 = arith.constant 0 : index
    %3 = vector.load %arg2[%c0_3, %c0_4] : memref<8x1xf32, #tpu.memory_space<vmem>>, vector<8x1xf32>
    %4 = vector.broadcast %3 : vector<8x1xf32> to vector<8x128xf32>
    %5 = arith.addf %2, %4 : vector<8x128xf32>
    %c0_5 = arith.constant 0 : index
    %c0_6 = arith.constant 0 : index
    %6 = vector.load %arg5[%c0_5, %c0_6] : memref<8x128xf32, #tpu.memory_space<vmem>>, vector<8x128xf32>
    %7 = arith.addf %5, %6 : vector<8x128xf32>
    %8 = arith.mulf %7, %7 : vector<8x128xf32>
    %cst_7 = arith.constant dense<0.000000e+00> : vector<128xf32>
    %9 = vector.multi_reduction <add>, %8, %cst_7 [0] : vector<8x128xf32> to vector<128xf32>
    %10 = vector.shape_cast %9 : vector<128xf32> to vector<1x128xf32>
    %cst_8 = arith.constant 8.000000e+00 : f32
    %11 = vector.broadcast %cst_8 : f32 to vector<1x128xf32>
    %12 = arith.divf %10, %11 : vector<1x128xf32>
    %cst_9 = arith.constant 9.99999974E-6 : f32
    %13 = vector.broadcast %cst_9 : f32 to vector<1x128xf32>
    %14 = arith.addf %12, %13 : vector<1x128xf32>
    %15 = math.rsqrt %14 : vector<1x128xf32>
    %16 = vector.broadcast %15 : vector<1x128xf32> to vector<8x128xf32>
    %17 = arith.mulf %7, %16 : vector<8x128xf32>
    %c0_10 = arith.constant 0 : index
    %c0_11 = arith.constant 0 : index
    %18 = vector.load %arg3[%c0_10, %c0_11] : memref<8x1xf32, #tpu.memory_space<vmem>>, vector<8x1xf32>
    %19 = vector.broadcast %18 : vector<8x1xf32> to vector<8x128xf32>
    %20 = arith.mulf %17, %19 : vector<8x128xf32>
    %21 = arith.addf %20, %6 : vector<8x128xf32>
    %22 = arith.addf %21, %5 : vector<8x128xf32>
    %c0_12 = arith.constant 0 : index
    %c0_13 = arith.constant 0 : index
    %23 = vector.load %arg6[%c0_12, %c0_13] : memref<8x128xf32, #tpu.memory_space<vmem>>, vector<8x128xf32>
    tpu.vector_store %arg6[%c0_12, %c0_13], %22 {strides = array<i32>} : memref<8x128xf32, #tpu.memory_space<vmem>>, vector<8x128xf32>,
    return
  }
  func.func @transform_0(%arg0: i32) -> (i32, i32) {
    %c0_i32 = arith.constant 0 : i32
    %c0_i32_0 = arith.constant 0 : i32
    %c0_i32_1 = arith.constant 0 : i32
    return %c0_i32, %c0_i32_0 : i32, i32
  }
  func.func @transform_1(%arg0: i32) -> (i32, i32) {
    %c0_i32 = arith.constant 0 : i32
    %c0_i32_0 = arith.constant 0 : i32
    %c0_i32_1 = arith.constant 0 : i32
    return %c0_i32, %c0_i32_0 : i32, i32
  }
  func.func @transform_2(%arg0: i32) -> (i32, i32) {
    %c0_i32 = arith.constant 0 : i32
    %c0_i32_0 = arith.constant 0 : i32
    %c0_i32_1 = arith.constant 0 : i32
    return %c0_i32, %c0_i32_0 : i32, i32
  }
  func.func @transform_3(%arg0: i32) -> (i32, i32) {
    %c0_i32 = arith.constant 0 : i32
    %c0_i32_0 = arith.constant 0 : i32
    return %c0_i32, %arg0 : i32, i32
  }
  func.func @transform_4(%arg0: i32) -> (i32, i32) {
    %c0_i32 = arith.constant 0 : i32
    %c0_i32_0 = arith.constant 0 : i32
    return %c0_i32, %arg0 : i32, i32
  }
  func.func @transform_5(%arg0: i32) -> (i32, i32) {
    %c0_i32 = arith.constant 0 : i32
    %c0_i32_0 = arith.constant 0 : i32
    return %c0_i32, %arg0 : i32, i32
  }
}

module attributes {stable_mosaic.version = 11 : i64} {
  func.func @_conv_vim_kernel(%arg0: i32, %arg1: memref<8x432xbf16, #tpu.memory_space<vmem>>, %arg2: memref<8x1xf32, #tpu.memory_space<vmem>>, %arg3: memref<8x1xf32, #tpu.memory_space<vmem>>, %arg4: memref<432x128xbf16, #tpu.memory_space<vmem>>, %arg5: memref<8x128xf32, #tpu.memory_space<vmem>>, %arg6: memref<8x128xf32, #tpu.memory_space<vmem>>) attributes {dimension_semantics = [#tpu.dimension_semantics<parallel>], iteration_bounds = array<i64: 1>, scalar_prefetch = 0 : i64, scratch_operands = 0 : i64, tpu.core_type = #tpu.core_type<tc>, window_params = [{pipeline_mode = #tpu.pipeline_mode<synchronous>, transform_indices = @transform_0, window_bounds = array<i64: 8, 432>}, {pipeline_mode = #tpu.pipeline_mode<synchronous>, transform_indices = @transform_1, window_bounds = array<i64: 8, 1>}, {pipeline_mode = #tpu.pipeline_mode<synchronous>, transform_indices = @transform_2, window_bounds = array<i64: 8, 1>}, {transform_indices = @transform_3, window_bounds = array<i64: 432, 128>}, {transform_indices = @transform_4, window_bounds = array<i64: 8, 128>}, {transform_indices = @transform_5, window_bounds = array<i64: 8, 128>}]} {
    %c0 = arith.constant 0 : index
    %c0_0 = arith.constant 0 : index
    %0 = vector.load %arg1[%c0, %c0_0] : memref<8x432xbf16, #tpu.memory_space<vmem>>, vector<8x432xbf16>
    %c0_1 = arith.constant 0 : index
    %c0_2 = arith.constant 0 : index
    %1 = vector.load %arg4[%c0_1, %c0_2] : memref<432x128xbf16, #tpu.memory_space<vmem>>, vector<432x128xbf16>
    %cst = arith.constant dense<0.000000e+00> : vector<8x128xf32>
    %2 = tpu.matmul %0, %1, %cst {dimension_numbers = #tpu.dot_dimension_numbers<[1], [0], [0], [1], [0, 0, 1, 1], [], []>} : vector<8x432xbf16>, vector<432x128xbf16>, vector<8x128xf32> -> vector<8x128xf32>
    %c0_3 = arith.constant 0 : index
    %c0_4 = arith.constant 0 : index
    %3 = vector.load %arg2[%c0_3, %c0_4] : memref<8x1xf32, #tpu.memory_space<vmem>>, vector<8x1xf32>
    %4 = vector.broadcast %3 : vector<8x1xf32> to vector<8x128xf32>
    %5 = arith.addf %2, %4 : vector<8x128xf32>
    %c0_5 = arith.constant 0 : index
    %c0_6 = arith.constant 0 : index
    %6 = vector.load %arg5[%c0_5, %c0_6] : memref<8x128xf32, #tpu.memory_space<vmem>>, vector<8x128xf32>
    %7 = arith.addf %5, %6 : vector<8x128xf32>
    %8 = arith.mulf %7, %7 : vector<8x128xf32>
    %cst_7 = arith.constant dense<0.000000e+00> : vector<128xf32>
    %9 = vector.multi_reduction <add>, %8, %cst_7 [0] : vector<8x128xf32> to vector<128xf32>
    %10 = vector.shape_cast %9 : vector<128xf32> to vector<1x128xf32>
    %cst_8 = arith.constant 8.000000e+00 : f32
    %11 = vector.broadcast %cst_8 : f32 to vector<1x128xf32>
    %12 = arith.divf %10, %11 : vector<1x128xf32>
    %cst_9 = arith.constant 9.99999974E-6 : f32
    %13 = vector.broadcast %cst_9 : f32 to vector<1x128xf32>
    %14 = arith.addf %12, %13 : vector<1x128xf32>
    %15 = math.rsqrt %14 : vector<1x128xf32>
    %16 = vector.broadcast %15 : vector<1x128xf32> to vector<8x128xf32>
    %17 = arith.mulf %7, %16 : vector<8x128xf32>
    %c0_10 = arith.constant 0 : index
    %c0_11 = arith.constant 0 : index
    %18 = vector.load %arg3[%c0_10, %c0_11] : memref<8x1xf32, #tpu.memory_space<vmem>>, vector<8x1xf32>
    %19 = vector.broadcast %18 : vector<8x1xf32> to vector<8x128xf32>
    %20 = arith.mulf %17, %19 : vector<8x128xf32>
    %21 = arith.addf %20, %6 : vector<8x128xf32>
    %22 = arith.addf %21, %5 : vector<8x128xf32>
    %c0_12 = arith.constant 0 : index
    %c0_13 = arith.constant 0 : index
    %23 = vector.load %arg6[%c0_12, %c0_13] : memref<8x128xf32, #tpu.memory_space<vmem>>, vector<8x128xf32>
    tpu.vector_store %arg6[%c0_12, %c0_13], %22 {strides = array<i32>} : memref<8x128xf32, #tpu.memory_space<vmem>>, vector<8x128xf32>,
    return
  }
  func.func @transform_0(%arg0: i32) -> (i32, i32) {
    %c0_i32 = arith.constant 0 : i32
    %c0_i32_0 = arith.constant 0 : i32
    %c0_i32_1 = arith.constant 0 : i32
    return %c0_i32, %c0_i32_0 : i32, i32
  }
  func.func @transform_1(%arg0: i32) -> (i32, i32) {
    %c0_i32 = arith.constant 0 : i32
    %c0_i32_0 = arith.constant 0 : i32
    %c0_i32_1 = arith.constant 0 : i32
    return %c0_i32, %c0_i32_0 : i32, i32
  }
  func.func @transform_2(%arg0: i32) -> (i32, i32) {
    %c0_i32 = arith.constant 0 : i32
    %c0_i32_0 = arith.constant 0 : i32
    %c0_i32_1 = arith.constant 0 : i32
    return %c0_i32, %c0_i32_0 : i32, i32
  }
  func.func @transform_3(%arg0: i32) -> (i32, i32) {
    %c0_i32 = arith.constant 0 : i32
    %c0_i32_0 = arith.constant 0 : i32
    return %c0_i32, %arg0 : i32, i32
  }
  func.func @transform_4(%arg0: i32) -> (i32, i32) {
    %c0_i32 = arith.constant 0 : i32
    %c0_i32_0 = arith.constant 0 : i32
    return %c0_i32, %arg0 : i32, i32
  }
  func.func @transform_5(%arg0: i32) -> (i32, i32) {
    %c0_i32 = arith.constant 0 : i32
    %c0_i32_0 = arith.constant 0 : i32
    return %c0_i32, %arg0 : i32, i32
  }
}

module attributes {stable_mosaic.version = 11 : i64} {
  func.func @_conv_kernel(%arg0: i32, %arg1: memref<16x648xbf16, #tpu.memory_space<vmem>>, %arg2: memref<16x1xf32, #tpu.memory_space<vmem>>, %arg3: memref<648x128xbf16, #tpu.memory_space<vmem>>, %arg4: memref<16x128xf32, #tpu.memory_space<vmem>>) attributes {dimension_semantics = [#tpu.dimension_semantics<parallel>], iteration_bounds = array<i64: 1>, scalar_prefetch = 0 : i64, scratch_operands = 0 : i64, tpu.core_type = #tpu.core_type<tc>, window_params = [{pipeline_mode = #tpu.pipeline_mode<synchronous>, transform_indices = @transform_0, window_bounds = array<i64: 16, 648>}, {pipeline_mode = #tpu.pipeline_mode<synchronous>, transform_indices = @transform_1, window_bounds = array<i64: 16, 1>}, {transform_indices = @transform_2, window_bounds = array<i64: 648, 128>}, {transform_indices = @transform_3, window_bounds = array<i64: 16, 128>}]} {
    %c0 = arith.constant 0 : index
    %c0_0 = arith.constant 0 : index
    %0 = vector.load %arg1[%c0, %c0_0] : memref<16x648xbf16, #tpu.memory_space<vmem>>, vector<16x648xbf16>
    %c0_1 = arith.constant 0 : index
    %c0_2 = arith.constant 0 : index
    %1 = vector.load %arg3[%c0_1, %c0_2] : memref<648x128xbf16, #tpu.memory_space<vmem>>, vector<648x128xbf16>
    %cst = arith.constant dense<0.000000e+00> : vector<16x128xf32>
    %2 = tpu.matmul %0, %1, %cst {dimension_numbers = #tpu.dot_dimension_numbers<[1], [0], [0], [1], [0, 0, 1, 1], [], []>} : vector<16x648xbf16>, vector<648x128xbf16>, vector<16x128xf32> -> vector<16x128xf32>
    %c0_3 = arith.constant 0 : index
    %c0_4 = arith.constant 0 : index
    %3 = vector.load %arg2[%c0_3, %c0_4] : memref<16x1xf32, #tpu.memory_space<vmem>>, vector<16x1xf32>
    %4 = vector.broadcast %3 : vector<16x1xf32> to vector<16x128xf32>
    %5 = arith.addf %2, %4 : vector<16x128xf32>
    %c0_5 = arith.constant 0 : index
    %c0_6 = arith.constant 0 : index
    %6 = vector.load %arg4[%c0_5, %c0_6] : memref<16x128xf32, #tpu.memory_space<vmem>>, vector<16x128xf32>
    tpu.vector_store %arg4[%c0_5, %c0_6], %5 {strides = array<i32>} : memref<16x128xf32, #tpu.memory_space<vmem>>, vector<16x128xf32>,
    return
  }
  func.func @transform_0(%arg0: i32) -> (i32, i32) {
    %c0_i32 = arith.constant 0 : i32
    %c0_i32_0 = arith.constant 0 : i32
    %c0_i32_1 = arith.constant 0 : i32
    return %c0_i32, %c0_i32_0 : i32, i32
  }
  func.func @transform_1(%arg0: i32) -> (i32, i32) {
    %c0_i32 = arith.constant 0 : i32
    %c0_i32_0 = arith.constant 0 : i32
    %c0_i32_1 = arith.constant 0 : i32
    return %c0_i32, %c0_i32_0 : i32, i32
  }
  func.func @transform_2(%arg0: i32) -> (i32, i32) {
    %c0_i32 = arith.constant 0 : i32
    %c0_i32_0 = arith.constant 0 : i32
    return %c0_i32, %arg0 : i32, i32
  }
  func.func @transform_3(%arg0: i32) -> (i32, i32) {
    %c0_i32 = arith.constant 0 : i32
    %c0_i32_0 = arith.constant 0 : i32
    return %c0_i32, %arg0 : i32, i32
  }
}

</mosaic_0001>

<llo_original>
// kernel: downsample_with_dfs_forward.4
$region0: #{downsample_with_dfs_forward.4}
  #allocation0 [shape = 'u32[]', space=smem, size = 0x4, offset = 0x4, fixed_abs, tag = 'smem constant byte address 0x4 - core index']
  #allocation1 [shape = 'u32[144,128]{1,0:T(1,128)}', space=vmem, size = 0x12000, scoped, tag = 'internal scratch']
  %s0 = inlined_call_operand.vmem [shape: bf16[8,32], index: 0, kind: input, shape index: {}]
  %s1 = inlined_call_operand.vmem [shape: f32[8,1], index: 1, kind: input, shape index: {}]
  %s2 = inlined_call_operand.vmem [shape: bf16[32,128], index: 2, kind: input, shape index: {}]
  %s3 = inlined_call_operand.vmem [shape: f32[8,128], index: 3, kind: output, shape index: {}]
  %s4 = sld [smem:[#allocation0]]
  $region22: #{downsample_with_dfs_forward.4} parent=0
    _
  %s6 = ssub.s32 1, %s4
  %s7 = scalar_select 0, %s6, %s4
  // Predicated region
  $region2: #{downsample_with_dfs_forward.4} parent=0 // pred_check
    _
  $region3: #{downsample_with_dfs_forward.4} parent=0 // pred_check_branch
    %9 = sbr.rel (0) target = $region5
  $region4: #{downsample_with_dfs_forward.4} parent=0 // pred_region
    _
  $region5: #{downsample_with_dfs_forward.4} parent=0 // pred_fallthru
    _
  // Predicated region
  $region6: #{downsample_with_dfs_forward.4} parent=0 // pred_check
    _
  $region7: #{downsample_with_dfs_forward.4} parent=0 // pred_check_branch
    %11 = sbr.rel (0) target = $region9
  $region8: #{downsample_with_dfs_forward.4} parent=0 // pred_region
    _
  $region9: #{downsample_with_dfs_forward.4} parent=0 // pred_fallthru
    _
  // Predicated region
  $region10: #{downsample_with_dfs_forward.4} parent=0 // pred_check
    _
  $region11: #{downsample_with_dfs_forward.4} parent=0 // pred_check_branch
    %13 = sbr.rel (0) target = $region13
  $region12: #{downsample_with_dfs_forward.4} parent=0 // pred_region
    _
  $region13: #{downsample_with_dfs_forward.4} parent=0 // pred_fallthru
    _
  %v15 = vld [vmem:[%s0] sm:$0xf]
  %v16 = vld [vmem:[%s2] sm:$0xf]
  %v17 = vld [vmem:[%s2 + $0x4] sm:$0xf]
  %v18 = vld [vmem:[%s2 + $0x8] sm:$0xf]
  %v19 = vld [vmem:[%s2 + $0xc] sm:$0xf]
  %v20 = vld [vmem:[%s1] sm:$0xff]
  %22 = vset.pattern.permute.xlu0 0
  %23 = vperm.xlu0 %22, %v20
  %v24 = vpop.permute.xlu0 %23
  %v30 = vunpack.c.l.b16 %v16
  %v31 = vunpack.c.l.b16 %v17
  %v32 = vunpack.c.l.b16 %v18
  %v33 = vunpack.c.l.b16 %v19
  %v34 = vpack.c.b16 %v31, %v30
  %v35 = vpack.c.b16 %v33, %v32
  %vm38 = vcmask 261120
  %v40 = vsel %vm38, %v15, 0
  %42 = vmatprep.subr.bf16.mxu0 0
  %43 = vmatpush1.bf16.msra.mxu0 %v34
  %44 = vmatprep.subr.bf16.mxu0 0
  %45 = vmatpush1.bf16.msra.mxu0 %v35
  %46 = vmatprep.subr.bf16.mxu0 0
  %47 = vmatpush1.bf16.msra.mxu0 0
  %48 = vmatprep.subr.bf16.mxu0 0
  %49 = vmatpush1.bf16.msra.mxu0 0
  %50 = vmatprep.subr.bf16.mxu0 0
  %51 = vmatpush1.bf16.msra.mxu0 0
  %52 = vmatprep.subr.bf16.mxu0 0
  %53 = vmatpush1.bf16.msra.mxu0 0
  %54 = vmatprep.subr.bf16.mxu0 0
  %55 = vmatpush1.bf16.msra.mxu0 0
  %56 = vmatprep.subr.bf16.mxu0 0
  %57 = vmatpush1.bf16.msra.mxu0 0
  %58 = vmatprep.subr.bf16.mxu0 0
  %59 = vmatpush1.bf16.msra.mxu0 0
  %60 = vmatprep.subr.bf16.mxu0 0
  %61 = vmatpush1.bf16.msra.mxu0 0
  %62 = vmatprep.subr.bf16.mxu0 0
  %63 = vmatpush1.bf16.msra.mxu0 0
  %64 = vmatprep.subr.bf16.mxu0 0
  %65 = vmatpush1.bf16.msra.mxu0 0
  %66 = vmatprep.subr.bf16.mxu0 0
  %67 = vmatpush1.bf16.msra.mxu0 0
  %68 = vmatprep.subr.bf16.mxu0 0
  %69 = vmatpush1.bf16.msra.mxu0 0
  %70 = vmatprep.subr.bf16.mxu0 0
  %71 = vmatpush1.bf16.msra.mxu0 0
  %72 = vmatprep.subr.bf16.mxu0 0
  %73 = vmatpush1.bf16.msra.mxu0 0
  %74 = vmatprep.mubr.bf16.mxu0 0
  %75 = vmatmul.mubr.bf16.gmra.mrb[0].mxu0 %v40
  %v76 = vpop.f32.mrb[0].mxu0
  %v77 = vadd.f32 %v24, %v76
  %v78 = vpop.f32.mrb[0].mxu0
  %v79 = vpop.f32.mrb[0].mxu0
  %v80 = vpop.f32.mrb[0].mxu0
  %81 = vdwg.mxu0
  %82 = vst [vmem:[%s3] sm:$0xff] %v77
  // Predicated region
  $region14: #{downsample_with_dfs_forward.4} parent=0 // pred_check
    _
  $region15: #{downsample_with_dfs_forward.4} parent=0 // pred_check_branch
    %84 = sbr.rel (0) target = $region17
  $region16: #{downsample_with_dfs_forward.4} parent=0 // pred_region
    _
  $region17: #{downsample_with_dfs_forward.4} parent=0 // pred_fallthru
    _
  // Predicated region
  $region18: #{downsample_with_dfs_forward.4} parent=0 // pred_check
    _
  $region19: #{downsample_with_dfs_forward.4} parent=0 // pred_check_branch
    %86 = sbr.rel (0) target = $region21
  $region20: #{downsample_with_dfs_forward.4} parent=0 // pred_region
    _
  $region21: #{downsample_with_dfs_forward.4} parent=0 // pred_fallthru
    _

// kernel: tile.14
$region0: #{tile.14}
  %s0 = inlined_call_operand.vmem [shape: f32[8,2,64], index: 0, kind: input, shape index: {}]
  %s1 = inlined_call_operand.vmem [shape: f32[8,128], index: 1, kind: output, shape index: {}]
  $region1: #{tile.14} parent=0
    #allocation0 [shape = 'u8[32768]{0}', space=vmem, size = 0x8000, scoped, tag = 'scoped mem for input reshape']
    %s3 = sshllo.u32 0, 2
    %s4 = smul.addr 2, 7
    %s5 = scalar_lea.vmem %s0, %s4
    %v6 = vld [vmem:[%s5] sm:%s3]
    %s7 = scalar_lea.vmem [#allocation0], 56
    %8 = vst [vmem:[%s7] sm:%s3] %v6
    %s9 = smul.addr 2, 6
    %s10 = scalar_lea.vmem %s0, %s9
    %v11 = vld [vmem:[%s10] sm:%s3]
    %s12 = scalar_lea.vmem [#allocation0], 48
    %13 = vst [vmem:[%s12] sm:%s3] %v11
    %s14 = smul.addr 2, 5
    %s15 = scalar_lea.vmem %s0, %s14
    %v16 = vld [vmem:[%s15] sm:%s3]
    %s17 = scalar_lea.vmem [#allocation0], 40
    %18 = vst [vmem:[%s17] sm:%s3] %v16
    %s19 = smul.addr 2, 4
    %s20 = scalar_lea.vmem %s0, %s19
    %v21 = vld [vmem:[%s20] sm:%s3]
    %s22 = scalar_lea.vmem [#allocation0], 32
    %23 = vst [vmem:[%s22] sm:%s3] %v21
    %s24 = smul.addr 2, 3
    %s25 = scalar_lea.vmem %s0, %s24
    %v26 = vld [vmem:[%s25] sm:%s3]
    %s27 = scalar_lea.vmem [#allocation0], 24
    %28 = vst [vmem:[%s27] sm:%s3] %v26
    %s29 = smul.addr 2, 2
    %s30 = scalar_lea.vmem %s0, %s29
    %v31 = vld [vmem:[%s30] sm:%s3]
    %s32 = scalar_lea.vmem [#allocation0], 16
    %33 = vst [vmem:[%s32] sm:%s3] %v31
    %s34 = scalar_lea.vmem %s0, 2
    %v35 = vld [vmem:[%s34] sm:%s3]
    %s36 = scalar_lea.vmem [#allocation0], 8
    %37 = vst [vmem:[%s36] sm:%s3] %v35
    %v38 = vld [vmem:[%s0] sm:%s3]
    %39 = vst [vmem:[#allocation0] sm:%s3] %v38
    %v40 = vld [vmem:[#allocation0] ss:$8 sm:$0xf]
    %v41 = vld [vmem:[#allocation0] ss:$8 sm:$0xf0]
    %vm42 = vcmask 1047556
    %v43 = vsel %vm42, %v41, %v40
    %vm44 = vcmask 523264
    %45 = vst.msk [vmem:[%s1] sm:$0xff] %vm44, %v43
    %s46 = scalar_lea.vmem [#allocation0], 1
    %v47 = vld [vmem:[%s46] ss:$8 sm:$0xf]
    %s48 = scalar_lea.vmem [#allocation0], 1
    %v49 = vld [vmem:[%s48] ss:$8 sm:$0xf0]
    %vm50 = vcmask 1047556
    %v51 = vsel %vm50, %v49, %v47
    %52 = vrot.lane.b32.xlu0 %v51, 64
    %v53 = vpop.permute.xlu0 %52
    %vm54 = vcmask 1048064
    %55 = vst.msk [vmem:[%s1] sm:$0xff] %vm54, %v53

// kernel: downsample_with_dfs_forward.5
$region0: #{downsample_with_dfs_forward.5}
  #allocation0 [shape = 'u32[]', space=smem, size = 0x4, offset = 0x4, fixed_abs, tag = 'smem constant byte address 0x4 - core index']
  #allocation1 [shape = 'u32[144,128]{1,0:T(1,128)}', space=vmem, size = 0x12000, scoped, tag = 'internal scratch']
  %s0 = inlined_call_operand.vmem [shape: bf16[8,216], index: 0, kind: input, shape index: {}]
  %s1 = inlined_call_operand.vmem [shape: f32[8,1], index: 1, kind: input, shape index: {}]
  %s2 = inlined_call_operand.vmem [shape: f32[8,1], index: 2, kind: input, shape index: {}]
  %s3 = inlined_call_operand.vmem [shape: bf16[216,128], index: 3, kind: input, shape index: {}]
  %s4 = inlined_call_operand.vmem [shape: f32[8,128], index: 4, kind: input, shape index: {}]
  %s5 = inlined_call_operand.vmem [shape: f32[8,128], index: 5, kind: output, shape index: {}]
  %s6 = sld [smem:[#allocation0]]
  $region30: #{downsample_with_dfs_forward.5} parent=0
    _
  %s8 = ssub.s32 1, %s6
  %s9 = scalar_select 0, %s8, %s6
  // Predicated region
  $region2: #{downsample_with_dfs_forward.5} parent=0 // pred_check
    _
  $region3: #{downsample_with_dfs_forward.5} parent=0 // pred_check_branch
    %11 = sbr.rel (0) target = $region5
  $region4: #{downsample_with_dfs_forward.5} parent=0 // pred_region
    _
  $region5: #{downsample_with_dfs_forward.5} parent=0 // pred_fallthru
    _
  // Predicated region
  $region6: #{downsample_with_dfs_forward.5} parent=0 // pred_check
    _
  $region7: #{downsample_with_dfs_forward.5} parent=0 // pred_check_branch
    %13 = sbr.rel (0) target = $region9
  $region8: #{downsample_with_dfs_forward.5} parent=0 // pred_region
    _
  $region9: #{downsample_with_dfs_forward.5} parent=0 // pred_fallthru
    _
  // Predicated region
  $region10: #{downsample_with_dfs_forward.5} parent=0 // pred_check
    _
  $region11: #{downsample_with_dfs_forward.5} parent=0 // pred_check_branch
    %15 = sbr.rel (0) target = $region13
  $region12: #{downsample_with_dfs_forward.5} parent=0 // pred_region
    _
  $region13: #{downsample_with_dfs_forward.5} parent=0 // pred_fallthru
    _
  // Predicated region
  $region14: #{downsample_with_dfs_forward.5} parent=0 // pred_check
    _
  $region15: #{downsample_with_dfs_forward.5} parent=0 // pred_check_branch
    %17 = sbr.rel (0) target = $region17
  $region16: #{downsample_with_dfs_forward.5} parent=0 // pred_region
    _
  $region17: #{downsample_with_dfs_forward.5} parent=0 // pred_fallthru
    _
  // Predicated region
  $region18: #{downsample_with_dfs_forward.5} parent=0 // pred_check
    _
  $region19: #{downsample_with_dfs_forward.5} parent=0 // pred_check_branch
    %19 = sbr.rel (0) target = $region21
  $region20: #{downsample_with_dfs_forward.5} parent=0 // pred_region
    _
  $region21: #{downsample_with_dfs_forward.5} parent=0 // pred_fallthru
    _
  %v21 = vld [vmem:[%s0] sm:$0xff]
  %v22 = vld [vmem:[%s3] sm:$0xf]
  %v23 = vld [vmem:[%s3 + $0x4] sm:$0xf]
  %v24 = vld [vmem:[%s3 + $0x8] sm:$0xf]
  %v25 = vld [vmem:[%s3 + $0xc] sm:$0xf]
  %v26 = vld [vmem:[%s3 + $0x10] sm:$0xf]
  %v27 = vld [vmem:[%s3 + $0x14] sm:$0xf]
  %v28 = vld [vmem:[%s3 + $0x18] sm:$0xf]
  %v29 = vld [vmem:[%s3 + $0x1c] sm:$0xf]
  %v30 = vld [vmem:[%s3 + $0x20] sm:$0xf]
  %v31 = vld [vmem:[%s3 + $0x24] sm:$0xf]
  %v32 = vld [vmem:[%s3 + $0x28] sm:$0xf]
  %v33 = vld [vmem:[%s3 + $0x2c] sm:$0xf]
  %v34 = vld [vmem:[%s3 + $0x30] sm:$0xf]
  %v35 = vld [vmem:[%s3 + $0x34] sm:$0xf]
  %v36 = vld [vmem:[%s3 + $0x38] sm:$0xf]
  %v37 = vld [vmem:[%s3 + $0x3c] sm:$0xf]
  %v38 = vld [vmem:[%s3 + $0x40] sm:$0xf]
  %v39 = vld [vmem:[%s3 + $0x44] sm:$0xf]
  %v40 = vld [vmem:[%s3 + $0x48] sm:$0xf]
  %v41 = vld [vmem:[%s3 + $0x4c] sm:$0xf]
  %v42 = vld [vmem:[%s3 + $0x50] sm:$0xf]
  %v43 = vld [vmem:[%s3 + $0x54] sm:$0xf]
  %v44 = vld [vmem:[%s3 + $0x58] sm:$0xf]
  %v45 = vld [vmem:[%s3 + $0x5c] sm:$0xf]
  %v46 = vld [vmem:[%s3 + $0x60] sm:$0xf]
  %v47 = vld [vmem:[%s3 + $0x64] sm:$0xf]
  %v48 = vld [vmem:[%s3 + $0x68] sm:$0xf]
  %v49 = vld [vmem:[%s1] sm:$0xff]
  %51 = vset.pattern.permute.xlu0 0
  %52 = vperm.xlu0 %51, %v49
  %v53 = vpop.permute.xlu0 %52
  %v56 = vunpack.c.l.b16 %v21
  %v57 = vunpack.c.h.b16 %v21
  %v58 = vpack.c.b16 %v56, %v56
  %v59 = vpack.c.b16 %v57, %v57
  %v88 = vunpack.c.l.b16 %v22
  %v89 = vunpack.c.l.b16 %v23
  %v90 = vunpack.c.l.b16 %v24
  %v91 = vunpack.c.l.b16 %v25
  %v92 = vunpack.c.l.b16 %v26
  %v93 = vunpack.c.l.b16 %v27
  %v94 = vunpack.c.l.b16 %v28
  %v95 = vunpack.c.l.b16 %v29
  %v96 = vunpack.c.l.b16 %v30
  %v97 = vunpack.c.l.b16 %v31
  %v98 = vunpack.c.l.b16 %v32
  %v99 = vunpack.c.l.b16 %v33
  %v100 = vunpack.c.l.b16 %v34
  %v101 = vunpack.c.l.b16 %v35
  %v102 = vunpack.c.l.b16 %v36
  %v103 = vunpack.c.l.b16 %v37
  %v104 = vunpack.c.l.b16 %v38
  %v105 = vunpack.c.l.b16 %v39
  %v106 = vunpack.c.l.b16 %v40
  %v107 = vunpack.c.l.b16 %v41
  %v108 = vunpack.c.l.b16 %v42
  %v109 = vunpack.c.l.b16 %v43
  %v110 = vunpack.c.l.b16 %v44
  %v111 = vunpack.c.l.b16 %v45
  %v112 = vunpack.c.l.b16 %v46
  %v113 = vunpack.c.l.b16 %v47
  %v114 = vunpack.c.l.b16 %v48
  %v115 = vpack.c.b16 %v89, %v88
  %v116 = vpack.c.b16 %v91, %v90
  %v117 = vpack.c.b16 %v93, %v92
  %v118 = vpack.c.b16 %v95, %v94
  %v119 = vpack.c.b16 %v97, %v96
  %v120 = vpack.c.b16 %v99, %v98
  %v121 = vpack.c.b16 %v101, %v100
  %v122 = vpack.c.b16 %v103, %v102
  %v123 = vpack.c.b16 %v105, %v104
  %v124 = vpack.c.b16 %v107, %v106
  %v125 = vpack.c.b16 %v109, %v108
  %v126 = vpack.c.b16 %v111, %v110
  %v127 = vpack.c.b16 %v113, %v112
  %v128 = vpack.c.b16 %v114, %v114
  %vm142 = vcmask 719872
  %v144 = vsel %vm142, %v59, 0
  %vm146 = vcmask 1043456
  %v148 = vsel %vm146, %v128, 0
  %150 = vmatprep.subr.bf16.mxu0 0
  %151 = vmatpush1.bf16.msra.mxu0 %v115
  %152 = vmatprep.subr.bf16.mxu0 0
  %153 = vmatpush1.bf16.msra.mxu0 %v116
  %154 = vmatprep.subr.bf16.mxu0 0
  %155 = vmatpush1.bf16.msra.mxu0 %v117
  %156 = vmatprep.subr.bf16.mxu0 0
  %157 = vmatpush1.bf16.msra.mxu0 %v118
  %158 = vmatprep.subr.bf16.mxu0 0
  %159 = vmatpush1.bf16.msra.mxu0 %v119
  %160 = vmatprep.subr.bf16.mxu0 0
  %161 = vmatpush1.bf16.msra.mxu0 %v120
  %162 = vmatprep.subr.bf16.mxu0 0
  %163 = vmatpush1.bf16.msra.mxu0 %v121
  %164 = vmatprep.subr.bf16.mxu0 0
  %165 = vmatpush1.bf16.msra.mxu0 %v122
  %166 = vmatprep.subr.bf16.mxu0 0
  %167 = vmatpush1.bf16.msra.mxu0 %v123
  %168 = vmatprep.subr.bf16.mxu0 0
  %169 = vmatpush1.bf16.msra.mxu0 %v124
  %170 = vmatprep.subr.bf16.mxu0 0
  %171 = vmatpush1.bf16.msra.mxu0 %v125
  %172 = vmatprep.subr.bf16.mxu0 0
  %173 = vmatpush1.bf16.msra.mxu0 %v126
  %174 = vmatprep.subr.bf16.mxu0 0
  %175 = vmatpush1.bf16.msra.mxu0 %v127
  %176 = vmatprep.subr.bf16.mxu0 0
  %177 = vmatpush1.bf16.msra.mxu0 %v148
  %178 = vmatprep.subr.bf16.mxu0 0
  %179 = vmatpush1.bf16.msra.mxu0 0
  %180 = vmatprep.subr.bf16.mxu0 0
  %181 = vmatpush1.bf16.msra.mxu0 0
  %182 = vmatprep.mubr.bf16.mxu0 %v144
  %183 = vmatmul.mubr.bf16.gmra.mrb[0].mxu0 %v58
  %v184 = vpop.f32.mrb[0].mxu0
  %v185 = vadd.f32 %v53, %v184
  %v186 = vpop.f32.mrb[0].mxu0
  %v187 = vpop.f32.mrb[0].mxu0
  %v188 = vpop.f32.mrb[0].mxu0
  %189 = vdwg.mxu0
  %v190 = vld [vmem:[%s4] sm:$0xff]
  %v191 = vadd.f32 %v185, %v190
  %v192 = vmul.f32 %v191, %v191
  %v193 = vrot.slane %v192, 4
  %v194 = vadd.f32 %v192, %v193
  %v195 = vrot.slane %v194, 2
  %v196 = vadd.f32 %v194, %v195
  %v197 = vrot.slane %v196, 1
  %v198 = vadd.f32 %v196, %v197
  %v199 = vrcp.pop 8.0
  %v200 = vmul.f32 %v198, %v199
  %v201 = vadd.f32 %v200, 1e-05
  %v202 = vrsqrt.pop %v201
  %v203 = vmul.f32 %v191, %v202
  %v204 = vld [vmem:[%s2] sm:$0xff]
  %206 = vset.pattern.permute.xlu0 0
  %207 = vperm.xlu0 %206, %v204
  %v208 = vpop.permute.xlu0 %207
  %v210 = vmul.f32 %v203, %v208
  %v211 = vadd.f32 %v210, %v190
  %v212 = vadd.f32 %v211, %v185
  %213 = vst [vmem:[%s5] sm:$0xff] %v212
  // Predicated region
  $region22: #{downsample_with_dfs_forward.5} parent=0 // pred_check
    _
  $region23: #{downsample_with_dfs_forward.5} parent=0 // pred_check_branch
    %215 = sbr.rel (0) target = $region25
  $region24: #{downsample_with_dfs_forward.5} parent=0 // pred_region
    _
  $region25: #{downsample_with_dfs_forward.5} parent=0 // pred_fallthru
    _
  // Predicated region
  $region26: #{downsample_with_dfs_forward.5} parent=0 // pred_check
    _
  $region27: #{downsample_with_dfs_forward.5} parent=0 // pred_check_branch
    %217 = sbr.rel (0) target = $region29
  $region28: #{downsample_with_dfs_forward.5} parent=0 // pred_region
    _
  $region29: #{downsample_with_dfs_forward.5} parent=0 // pred_fallthru
    _

// kernel: downsample_with_dfs_forward.6
$region0: #{downsample_with_dfs_forward.6}
  #allocation0 [shape = 'u32[]', space=smem, size = 0x4, offset = 0x4, fixed_abs, tag = 'smem constant byte address 0x4 - core index']
  #allocation1 [shape = 'u32[144,128]{1,0:T(1,128)}', space=vmem, size = 0x12000, scoped, tag = 'internal scratch']
  %s0 = inlined_call_operand.vmem [shape: bf16[8,432], index: 0, kind: input, shape index: {}]
  %s1 = inlined_call_operand.vmem [shape: f32[8,1], index: 1, kind: input, shape index: {}]
  %s2 = inlined_call_operand.vmem [shape: f32[8,1], index: 2, kind: input, shape index: {}]
  %s3 = inlined_call_operand.vmem [shape: bf16[432,128], index: 3, kind: input, shape index: {}]
  %s4 = inlined_call_operand.vmem [shape: f32[8,128], index: 4, kind: input, shape index: {}]
  %s5 = inlined_call_operand.vmem [shape: f32[8,128], index: 5, kind: output, shape index: {}]
  %s6 = sld [smem:[#allocation0]]
  $region30: #{downsample_with_dfs_forward.6} parent=0
    _
  %s8 = ssub.s32 1, %s6
  %s9 = scalar_select 0, %s8, %s6
  // Predicated region
  $region2: #{downsample_with_dfs_forward.6} parent=0 // pred_check
    _
  $region3: #{downsample_with_dfs_forward.6} parent=0 // pred_check_branch
    %11 = sbr.rel (0) target = $region5
  $region4: #{downsample_with_dfs_forward.6} parent=0 // pred_region
    _
  $region5: #{downsample_with_dfs_forward.6} parent=0 // pred_fallthru
    _
  // Predicated region
  $region6: #{downsample_with_dfs_forward.6} parent=0 // pred_check
    _
  $region7: #{downsample_with_dfs_forward.6} parent=0 // pred_check_branch
    %13 = sbr.rel (0) target = $region9
  $region8: #{downsample_with_dfs_forward.6} parent=0 // pred_region
    _
  $region9: #{downsample_with_dfs_forward.6} parent=0 // pred_fallthru
    _
  // Predicated region
  $region10: #{downsample_with_dfs_forward.6} parent=0 // pred_check
    _
  $region11: #{downsample_with_dfs_forward.6} parent=0 // pred_check_branch
    %15 = sbr.rel (0) target = $region13
  $region12: #{downsample_with_dfs_forward.6} parent=0 // pred_region
    _
  $region13: #{downsample_with_dfs_forward.6} parent=0 // pred_fallthru
    _
  // Predicated region
  $region14: #{downsample_with_dfs_forward.6} parent=0 // pred_check
    _
  $region15: #{downsample_with_dfs_forward.6} parent=0 // pred_check_branch
    %17 = sbr.rel (0) target = $region17
  $region16: #{downsample_with_dfs_forward.6} parent=0 // pred_region
    _
  $region17: #{downsample_with_dfs_forward.6} parent=0 // pred_fallthru
    _
  // Predicated region
  $region18: #{downsample_with_dfs_forward.6} parent=0 // pred_check
    _
  $region19: #{downsample_with_dfs_forward.6} parent=0 // pred_check_branch
    %19 = sbr.rel (0) target = $region21
  $region20: #{downsample_with_dfs_forward.6} parent=0 // pred_region
    _
  $region21: #{downsample_with_dfs_forward.6} parent=0 // pred_fallthru
    _
  %v21 = vld [vmem:[%s0] sm:$0xff]
  %v22 = vld [vmem:[%s0 + $0x8] sm:$0xff]
  %v23 = vld [vmem:[%s3] sm:$0xf]
  %v24 = vld [vmem:[%s3 + $0x4] sm:$0xf]
  %v25 = vld [vmem:[%s3 + $0x8] sm:$0xf]
  %v26 = vld [vmem:[%s3 + $0xc] sm:$0xf]
  %v27 = vld [vmem:[%s3 + $0x10] sm:$0xf]
  %v28 = vld [vmem:[%s3 + $0x14] sm:$0xf]
  %v29 = vld [vmem:[%s3 + $0x18] sm:$0xf]
  %v30 = vld [vmem:[%s3 + $0x1c] sm:$0xf]
  %v31 = vld [vmem:[%s3 + $0x20] sm:$0xf]
  %v32 = vld [vmem:[%s3 + $0x24] sm:$0xf]
  %v33 = vld [vmem:[%s3 + $0x28] sm:$0xf]
  %v34 = vld [vmem:[%s3 + $0x2c] sm:$0xf]
  %v35 = vld [vmem:[%s3 + $0x30] sm:$0xf]
  %v36 = vld [vmem:[%s3 + $0x34] sm:$0xf]
  %v37 = vld [vmem:[%s3 + $0x38] sm:$0xf]
  %v38 = vld [vmem:[%s3 + $0x3c] sm:$0xf]
  %v39 = vld [vmem:[%s3 + $0x40] sm:$0xf]
  %v40 = vld [vmem:[%s3 + $0x44] sm:$0xf]
  %v41 = vld [vmem:[%s3 + $0x48] sm:$0xf]
  %v42 = vld [vmem:[%s3 + $0x4c] sm:$0xf]
  %v43 = vld [vmem:[%s3 + $0x50] sm:$0xf]
  %v44 = vld [vmem:[%s3 + $0x54] sm:$0xf]
  %v45 = vld [vmem:[%s3 + $0x58] sm:$0xf]
  %v46 = vld [vmem:[%s3 + $0x5c] sm:$0xf]
  %v47 = vld [vmem:[%s3 + $0x60] sm:$0xf]
  %v48 = vld [vmem:[%s3 + $0x64] sm:$0xf]
  %v49 = vld [vmem:[%s3 + $0x68] sm:$0xf]
  %v50 = vld [vmem:[%s3 + $0x6c] sm:$0xf]
  %v51 = vld [vmem:[%s3 + $0x70] sm:$0xf]
  %v52 = vld [vmem:[%s3 + $0x74] sm:$0xf]
  %v53 = vld [vmem:[%s3 + $0x78] sm:$0xf]
  %v54 = vld [vmem:[%s3 + $0x7c] sm:$0xf]
  %v55 = vld [vmem:[%s3 + $0x80] sm:$0xf]
  %v56 = vld [vmem:[%s3 + $0x84] sm:$0xf]
  %v57 = vld [vmem:[%s3 + $0x88] sm:$0xf]
  %v58 = vld [vmem:[%s3 + $0x8c] sm:$0xf]
  %v59 = vld [vmem:[%s3 + $0x90] sm:$0xf]
  %v60 = vld [vmem:[%s3 + $0x94] sm:$0xf]
  %v61 = vld [vmem:[%s3 + $0x98] sm:$0xf]
  %v62 = vld [vmem:[%s3 + $0x9c] sm:$0xf]
  %v63 = vld [vmem:[%s3 + $0xa0] sm:$0xf]
  %v64 = vld [vmem:[%s3 + $0xa4] sm:$0xf]
  %v65 = vld [vmem:[%s3 + $0xa8] sm:$0xf]
  %v66 = vld [vmem:[%s3 + $0xac] sm:$0xf]
  %v67 = vld [vmem:[%s3 + $0xb0] sm:$0xf]
  %v68 = vld [vmem:[%s3 + $0xb4] sm:$0xf]
  %v69 = vld [vmem:[%s3 + $0xb8] sm:$0xf]
  %v70 = vld [vmem:[%s3 + $0xbc] sm:$0xf]
  %v71 = vld [vmem:[%s3 + $0xc0] sm:$0xf]
  %v72 = vld [vmem:[%s3 + $0xc4] sm:$0xf]
  %v73 = vld [vmem:[%s3 + $0xc8] sm:$0xf]
  %v74 = vld [vmem:[%s3 + $0xcc] sm:$0xf]
  %v75 = vld [vmem:[%s3 + $0xd0] sm:$0xf]
  %v76 = vld [vmem:[%s3 + $0xd4] sm:$0xf]
  %v77 = vld [vmem:[%s1] sm:$0xff]
  %79 = vset.pattern.permute.xlu0 0
  %80 = vperm.xlu0 %79, %v77
  %v81 = vpop.permute.xlu0 %80
  %v85 = vunpack.c.l.b16 %v21
  %v86 = vunpack.c.h.b16 %v21
  %v87 = vunpack.c.l.b16 %v22
  %v88 = vunpack.c.h.b16 %v22
  %v89 = vpack.c.b16 %v85, %v85
  %v90 = vpack.c.b16 %v86, %v86
  %v91 = vpack.c.b16 %v87, %v87
  %v92 = vpack.c.b16 %v88, %v88
  %v150 = vunpack.c.l.b16 %v23
  %v151 = vunpack.c.l.b16 %v24
  %v152 = vunpack.c.l.b16 %v25
  %v153 = vunpack.c.l.b16 %v26
  %v154 = vunpack.c.l.b16 %v27
  %v155 = vunpack.c.l.b16 %v28
  %v156 = vunpack.c.l.b16 %v29
  %v157 = vunpack.c.l.b16 %v30
  %v158 = vunpack.c.l.b16 %v31
  %v159 = vunpack.c.l.b16 %v32
  %v160 = vunpack.c.l.b16 %v33
  %v161 = vunpack.c.l.b16 %v34
  %v162 = vunpack.c.l.b16 %v35
  %v163 = vunpack.c.l.b16 %v36
  %v164 = vunpack.c.l.b16 %v37
  %v165 = vunpack.c.l.b16 %v38
  %v166 = vunpack.c.l.b16 %v39
  %v167 = vunpack.c.l.b16 %v40
  %v168 = vunpack.c.l.b16 %v41
  %v169 = vunpack.c.l.b16 %v42
  %v170 = vunpack.c.l.b16 %v43
  %v171 = vunpack.c.l.b16 %v44
  %v172 = vunpack.c.l.b16 %v45
  %v173 = vunpack.c.l.b16 %v46
  %v174 = vunpack.c.l.b16 %v47
  %v175 = vunpack.c.l.b16 %v48
  %v176 = vunpack.c.l.b16 %v49
  %v177 = vunpack.c.l.b16 %v50
  %v178 = vunpack.c.l.b16 %v51
  %v179 = vunpack.c.l.b16 %v52
  %v180 = vunpack.c.l.b16 %v53
  %v181 = vunpack.c.l.b16 %v54
  %v182 = vunpack.c.l.b16 %v55
  %v183 = vunpack.c.l.b16 %v56
  %v184 = vunpack.c.l.b16 %v57
  %v185 = vunpack.c.l.b16 %v58
  %v186 = vunpack.c.l.b16 %v59
  %v187 = vunpack.c.l.b16 %v60
  %v188 = vunpack.c.l.b16 %v61
  %v189 = vunpack.c.l.b16 %v62
  %v190 = vunpack.c.l.b16 %v63
  %v191 = vunpack.c.l.b16 %v64
  %v192 = vunpack.c.l.b16 %v65
  %v193 = vunpack.c.l.b16 %v66
  %v194 = vunpack.c.l.b16 %v67
  %v195 = vunpack.c.l.b16 %v68
  %v196 = vunpack.c.l.b16 %v69
  %v197 = vunpack.c.l.b16 %v70
  %v198 = vunpack.c.l.b16 %v71
  %v199 = vunpack.c.l.b16 %v72
  %v200 = vunpack.c.l.b16 %v73
  %v201 = vunpack.c.l.b16 %v74
  %v202 = vunpack.c.l.b16 %v75
  %v203 = vunpack.c.l.b16 %v76
  %v204 = vpack.c.b16 %v151, %v150
  %v205 = vpack.c.b16 %v153, %v152
  %v206 = vpack.c.b16 %v155, %v154
  %v207 = vpack.c.b16 %v157, %v156
  %v208 = vpack.c.b16 %v159, %v158
  %v209 = vpack.c.b16 %v161, %v160
  %v210 = vpack.c.b16 %v163, %v162
  %v211 = vpack.c.b16 %v165, %v164
  %v212 = vpack.c.b16 %v167, %v166
  %v213 = vpack.c.b16 %v169, %v168
  %v214 = vpack.c.b16 %v171, %v170
  %v215 = vpack.c.b16 %v173, %v172
  %v216 = vpack.c.b16 %v175, %v174
  %v217 = vpack.c.b16 %v177, %v176
  %v218 = vpack.c.b16 %v179, %v178
  %v219 = vpack.c.b16 %v181, %v180
  %v220 = vpack.c.b16 %v183, %v182
  %v221 = vpack.c.b16 %v185, %v184
  %v222 = vpack.c.b16 %v187, %v186
  %v223 = vpack.c.b16 %v189, %v188
  %v224 = vpack.c.b16 %v191, %v190
  %v225 = vpack.c.b16 %v193, %v192
  %v226 = vpack.c.b16 %v195, %v194
  %v227 = vpack.c.b16 %v197, %v196
  %v228 = vpack.c.b16 %v199, %v198
  %v229 = vpack.c.b16 %v201, %v200
  %v230 = vpack.c.b16 %v203, %v202
  %vm258 = vcmask 392192
  %v260 = vsel %vm258, %v92, 0
  %262 = vmatprep.subr.bf16.mxu0 0
  %263 = vmatpush1.bf16.msra.mxu0 %v204
  %264 = vmatprep.subr.bf16.mxu0 0
  %265 = vmatpush1.bf16.msra.mxu0 %v205
  %266 = vmatprep.subr.bf16.mxu0 0
  %267 = vmatpush1.bf16.msra.mxu0 %v206
  %268 = vmatprep.subr.bf16.mxu0 0
  %269 = vmatpush1.bf16.msra.mxu0 %v207
  %270 = vmatprep.subr.bf16.mxu0 0
  %271 = vmatpush1.bf16.msra.mxu0 %v208
  %272 = vmatprep.subr.bf16.mxu0 0
  %273 = vmatpush1.bf16.msra.mxu0 %v209
  %274 = vmatprep.subr.bf16.mxu0 0
  %275 = vmatpush1.bf16.msra.mxu0 %v210
  %276 = vmatprep.subr.bf16.mxu0 0
  %277 = vmatpush1.bf16.msra.mxu0 %v211
  %278 = vmatprep.subr.bf16.mxu0 0
  %279 = vmatpush1.bf16.msra.mxu0 %v212
  %280 = vmatprep.subr.bf16.mxu0 0
  %281 = vmatpush1.bf16.msra.mxu0 %v213
  %282 = vmatprep.subr.bf16.mxu0 0
  %283 = vmatpush1.bf16.msra.mxu0 %v214
  %284 = vmatprep.subr.bf16.mxu0 0
  %285 = vmatpush1.bf16.msra.mxu0 %v215
  %286 = vmatprep.subr.bf16.mxu0 0
  %287 = vmatpush1.bf16.msra.mxu0 %v216
  %288 = vmatprep.subr.bf16.mxu0 0
  %289 = vmatpush1.bf16.msra.mxu0 %v217
  %290 = vmatprep.subr.bf16.mxu0 0
  %291 = vmatpush1.bf16.msra.mxu0 %v218
  %292 = vmatprep.subr.bf16.mxu0 0
  %293 = vmatpush1.bf16.msra.mxu0 %v219
  %294 = vmatprep.mubr.bf16.mxu0 %v90
  %295 = vmatmul.mubr.bf16.gmra.mrb[0].mxu0 %v89
  %v296 = vpop.f32.mrb[0].mxu0
  %v297 = vadd.f32 %v81, %v296
  %v298 = vpop.f32.mrb[0].mxu0
  %v299 = vpop.f32.mrb[0].mxu0
  %v300 = vpop.f32.mrb[0].mxu0
  %301 = vdwg.mxu0
  %302 = vmatprep.subr.bf16.mxu0 0
  %303 = vmatpush1.bf16.msra.mxu0 %v220
  %304 = vmatprep.subr.bf16.mxu0 0
  %305 = vmatpush1.bf16.msra.mxu0 %v221
  %306 = vmatprep.subr.bf16.mxu0 0
  %307 = vmatpush1.bf16.msra.mxu0 %v222
  %308 = vmatprep.subr.bf16.mxu0 0
  %309 = vmatpush1.bf16.msra.mxu0 %v223
  %310 = vmatprep.subr.bf16.mxu0 0
  %311 = vmatpush1.bf16.msra.mxu0 %v224
  %312 = vmatprep.subr.bf16.mxu0 0
  %313 = vmatpush1.bf16.msra.mxu0 %v225
  %314 = vmatprep.subr.bf16.mxu0 0
  %315 = vmatpush1.bf16.msra.mxu0 %v226
  %316 = vmatprep.subr.bf16.mxu0 0
  %317 = vmatpush1.bf16.msra.mxu0 %v227
  %318 = vmatprep.subr.bf16.mxu0 0
  %319 = vmatpush1.bf16.msra.mxu0 %v228
  %320 = vmatprep.subr.bf16.mxu0 0
  %321 = vmatpush1.bf16.msra.mxu0 %v229
  %322 = vmatprep.subr.bf16.mxu0 0
  %323 = vmatpush1.bf16.msra.mxu0 %v230
  %324 = vmatprep.subr.bf16.mxu0 0
  %325 = vmatpush1.bf16.msra.mxu0 0
  %326 = vmatprep.subr.bf16.mxu0 0
  %327 = vmatpush1.bf16.msra.mxu0 0
  %328 = vmatprep.subr.bf16.mxu0 0
  %329 = vmatpush1.bf16.msra.mxu0 0
  %330 = vmatprep.subr.bf16.mxu0 0
  %331 = vmatpush1.bf16.msra.mxu0 0
  %332 = vmatprep.subr.bf16.mxu0 0
  %333 = vmatpush1.bf16.msra.mxu0 0
  %334 = vmatprep.mubr.bf16.mxu0 %v260
  %335 = vmatmul.mubr.bf16.gmra.mrb[0].mxu0 %v91
  %v336 = vpop.f32.mrb[0].mxu0
  %v337 = vadd.f32 %v297, %v336
  %v338 = vpop.f32.mrb[0].mxu0
  %v339 = vpop.f32.mrb[0].mxu0
  %v340 = vpop.f32.mrb[0].mxu0
  %341 = vdwg.mxu0
  %v342 = vld [vmem:[%s4] sm:$0xff]
  %v343 = vadd.f32 %v337, %v342
  %v344 = vmul.f32 %v343, %v343
  %v345 = vrot.slane %v344, 4
  %v346 = vadd.f32 %v344, %v345
  %v347 = vrot.slane %v346, 2
  %v348 = vadd.f32 %v346, %v347
  %v349 = vrot.slane %v348, 1
  %v350 = vadd.f32 %v348, %v349
  %v351 = vrcp.pop 8.0
  %v352 = vmul.f32 %v350, %v351
  %v353 = vadd.f32 %v352, 1e-05
  %v354 = vrsqrt.pop %v353
  %v355 = vmul.f32 %v343, %v354
  %v356 = vld [vmem:[%s2] sm:$0xff]
  %358 = vset.pattern.permute.xlu0 0
  %359 = vperm.xlu0 %358, %v356
  %v360 = vpop.permute.xlu0 %359
  %v362 = vmul.f32 %v355, %v360
  %v363 = vadd.f32 %v362, %v342
  %v364 = vadd.f32 %v363, %v337
  %365 = vst [vmem:[%s5] sm:$0xff] %v364
  // Predicated region
  $region22: #{downsample_with_dfs_forward.6} parent=0 // pred_check
    _
  $region23: #{downsample_with_dfs_forward.6} parent=0 // pred_check_branch
    %367 = sbr.rel (0) target = $region25
  $region24: #{downsample_with_dfs_forward.6} parent=0 // pred_region
    _
  $region25: #{downsample_with_dfs_forward.6} parent=0 // pred_fallthru
    _
  // Predicated region
  $region26: #{downsample_with_dfs_forward.6} parent=0 // pred_check
    _
  $region27: #{downsample_with_dfs_forward.6} parent=0 // pred_check_branch
    %369 = sbr.rel (0) target = $region29
  $region28: #{downsample_with_dfs_forward.6} parent=0 // pred_region
    _
  $region29: #{downsample_with_dfs_forward.6} parent=0 // pred_fallthru
    _

// kernel: downsample_with_dfs_forward.7
$region0: #{downsample_with_dfs_forward.7}
  #allocation0 [shape = 'u32[]', space=smem, size = 0x4, offset = 0x4, fixed_abs, tag = 'smem constant byte address 0x4 - core index']
  #allocation1 [shape = 'u32[144,128]{1,0:T(1,128)}', space=vmem, size = 0x12000, scoped, tag = 'internal scratch']
  %s0 = inlined_call_operand.vmem [shape: bf16[16,648], index: 0, kind: input, shape index: {}]
  %s1 = inlined_call_operand.vmem [shape: f32[16,1], index: 1, kind: input, shape index: {}]
  %s2 = inlined_call_operand.vmem [shape: bf16[648,128], index: 2, kind: input, shape index: {}]
  %s3 = inlined_call_operand.vmem [shape: f32[16,128], index: 3, kind: output, shape index: {}]
  %s4 = sld [smem:[#allocation0]]
  $region22: #{downsample_with_dfs_forward.7} parent=0
    _
  %s6 = ssub.s32 1, %s4
  %s7 = scalar_select 0, %s6, %s4
  // Predicated region
  $region2: #{downsample_with_dfs_forward.7} parent=0 // pred_check
    _
  $region3: #{downsample_with_dfs_forward.7} parent=0 // pred_check_branch
    %9 = sbr.rel (0) target = $region5
  $region4: #{downsample_with_dfs_forward.7} parent=0 // pred_region
    _
  $region5: #{downsample_with_dfs_forward.7} parent=0 // pred_fallthru
    _
  // Predicated region
  $region6: #{downsample_with_dfs_forward.7} parent=0 // pred_check
    _
  $region7: #{downsample_with_dfs_forward.7} parent=0 // pred_check_branch
    %11 = sbr.rel (0) target = $region9
  $region8: #{downsample_with_dfs_forward.7} parent=0 // pred_region
    _
  $region9: #{downsample_with_dfs_forward.7} parent=0 // pred_fallthru
    _
  // Predicated region
  $region10: #{downsample_with_dfs_forward.7} parent=0 // pred_check
    _
  $region11: #{downsample_with_dfs_forward.7} parent=0 // pred_check_branch
    %13 = sbr.rel (0) target = $region13
  $region12: #{downsample_with_dfs_forward.7} parent=0 // pred_region
    _
  $region13: #{downsample_with_dfs_forward.7} parent=0 // pred_fallthru
    _
  %v15 = vld [vmem:[%s0] sm:$0xff]
  %v16 = vld [vmem:[%s0 + $0x8] sm:$0xff]
  %v17 = vld [vmem:[%s0 + $0x10] sm:$0xff]
  %v18 = vld [vmem:[%s0 + $0x18] sm:$0xff]
  %v19 = vld [vmem:[%s0 + $0x20] sm:$0xff]
  %v20 = vld [vmem:[%s0 + $0x28] sm:$0xff]
  %v21 = vld [vmem:[%s2] sm:$0xf]
  %v22 = vld [vmem:[%s2 + $0x4] sm:$0xf]
  %v23 = vld [vmem:[%s2 + $0x8] sm:$0xf]
  %v24 = vld [vmem:[%s2 + $0xc] sm:$0xf]
  %v25 = vld [vmem:[%s2 + $0x10] sm:$0xf]
  %v26 = vld [vmem:[%s2 + $0x14] sm:$0xf]
  %v27 = vld [vmem:[%s2 + $0x18] sm:$0xf]
  %v28 = vld [vmem:[%s2 + $0x1c] sm:$0xf]
  %v29 = vld [vmem:[%s2 + $0x20] sm:$0xf]
  %v30 = vld [vmem:[%s2 + $0x24] sm:$0xf]
  %v31 = vld [vmem:[%s2 + $0x28] sm:$0xf]
  %v32 = vld [vmem:[%s2 + $0x2c] sm:$0xf]
  %v33 = vld [vmem:[%s2 + $0x30] sm:$0xf]
  %v34 = vld [vmem:[%s2 + $0x34] sm:$0xf]
  %v35 = vld [vmem:[%s2 + $0x38] sm:$0xf]
  %v36 = vld [vmem:[%s2 + $0x3c] sm:$0xf]
  %v37 = vld [vmem:[%s2 + $0x40] sm:$0xf]
  %v38 = vld [vmem:[%s2 + $0x44] sm:$0xf]
  %v39 = vld [vmem:[%s2 + $0x48] sm:$0xf]
  %v40 = vld [vmem:[%s2 + $0x4c] sm:$0xf]
  %v41 = vld [vmem:[%s2 + $0x50] sm:$0xf]
  %v42 = vld [vmem:[%s2 + $0x54] sm:$0xf]
  %v43 = vld [vmem:[%s2 + $0x58] sm:$0xf]
  %v44 = vld [vmem:[%s2 + $0x5c] sm:$0xf]
  %v45 = vld [vmem:[%s2 + $0x60] sm:$0xf]
  %v46 = vld [vmem:[%s2 + $0x64] sm:$0xf]
  %v47 = vld [vmem:[%s2 + $0x68] sm:$0xf]
  %v48 = vld [vmem:[%s2 + $0x6c] sm:$0xf]
  %v49 = vld [vmem:[%s2 + $0x70] sm:$0xf]
  %v50 = vld [vmem:[%s2 + $0x74] sm:$0xf]
  %v51 = vld [vmem:[%s2 + $0x78] sm:$0xf]
  %v52 = vld [vmem:[%s2 + $0x7c] sm:$0xf]
  %v53 = vld [vmem:[%s2 + $0x80] sm:$0xf]
  %v54 = vld [vmem:[%s2 + $0x84] sm:$0xf]
  %v55 = vld [vmem:[%s2 + $0x88] sm:$0xf]
  %v56 = vld [vmem:[%s2 + $0x8c] sm:$0xf]
  %v57 = vld [vmem:[%s2 + $0x90] sm:$0xf]
  %v58 = vld [vmem:[%s2 + $0x94] sm:$0xf]
  %v59 = vld [vmem:[%s2 + $0x98] sm:$0xf]
  %v60 = vld [vmem:[%s2 + $0x9c] sm:$0xf]
  %v61 = vld [vmem:[%s2 + $0xa0] sm:$0xf]
  %v62 = vld [vmem:[%s2 + $0xa4] sm:$0xf]
  %v63 = vld [vmem:[%s2 + $0xa8] sm:$0xf]
  %v64 = vld [vmem:[%s2 + $0xac] sm:$0xf]
  %v65 = vld [vmem:[%s2 + $0xb0] sm:$0xf]
  %v66 = vld [vmem:[%s2 + $0xb4] sm:$0xf]
  %v67 = vld [vmem:[%s2 + $0xb8] sm:$0xf]
  %v68 = vld [vmem:[%s2 + $0xbc] sm:$0xf]
  %v69 = vld [vmem:[%s2 + $0xc0] sm:$0xf]
  %v70 = vld [vmem:[%s2 + $0xc4] sm:$0xf]
  %v71 = vld [vmem:[%s2 + $0xc8] sm:$0xf]
  %v72 = vld [vmem:[%s2 + $0xcc] sm:$0xf]
  %v73 = vld [vmem:[%s2 + $0xd0] sm:$0xf]
  %v74 = vld [vmem:[%s2 + $0xd4] sm:$0xf]
  %v75 = vld [vmem:[%s2 + $0xd8] sm:$0xf]
  %v76 = vld [vmem:[%s2 + $0xdc] sm:$0xf]
  %v77 = vld [vmem:[%s2 + $0xe0] sm:$0xf]
  %v78 = vld [vmem:[%s2 + $0xe4] sm:$0xf]
  %v79 = vld [vmem:[%s2 + $0xe8] sm:$0xf]
  %v80 = vld [vmem:[%s2 + $0xec] sm:$0xf]
  %v81 = vld [vmem:[%s2 + $0xf0] sm:$0xf]
  %v82 = vld [vmem:[%s2 + $0xf4] sm:$0xf]
  %v83 = vld [vmem:[%s2 + $0xf8] sm:$0xf]
  %v84 = vld [vmem:[%s2 + $0xfc] sm:$0xf]
  %v85 = vld [vmem:[%s2 + $0x100] sm:$0xf]
  %v86 = vld [vmem:[%s2 + $0x104] sm:$0xf]
  %v87 = vld [vmem:[%s2 + $0x108] sm:$0xf]
  %v88 = vld [vmem:[%s2 + $0x10c] sm:$0xf]
  %v89 = vld [vmem:[%s2 + $0x110] sm:$0xf]
  %v90 = vld [vmem:[%s2 + $0x114] sm:$0xf]
  %v91 = vld [vmem:[%s2 + $0x118] sm:$0xf]
  %v92 = vld [vmem:[%s2 + $0x11c] sm:$0xf]
  %v93 = vld [vmem:[%s2 + $0x120] sm:$0xf]
  %v94 = vld [vmem:[%s2 + $0x124] sm:$0xf]
  %v95 = vld [vmem:[%s2 + $0x128] sm:$0xf]
  %v96 = vld [vmem:[%s2 + $0x12c] sm:$0xf]
  %v97 = vld [vmem:[%s2 + $0x130] sm:$0xf]
  %v98 = vld [vmem:[%s2 + $0x134] sm:$0xf]
  %v99 = vld [vmem:[%s2 + $0x138] sm:$0xf]
  %v100 = vld [vmem:[%s2 + $0x13c] sm:$0xf]
  %v101 = vld [vmem:[%s2 + $0x140] sm:$0xf]
  %v102 = vld [vmem:[%s1] sm:$0xff]
  %v103 = vld [vmem:[%s1 + $0x8] sm:$0xff]
  %105 = vset.pattern.permute.xlu0 0
  %106 = vperm.xlu0 %105, %v102
  %v107 = vpop.permute.xlu0 %106
  %110 = vset.pattern.permute.xlu0 0
  %111 = vperm.xlu0 %110, %v103
  %v112 = vpop.permute.xlu0 %111
  %v120 = vunpack.c.l.b16 %v15
  %v121 = vunpack.c.h.b16 %v15
  %v122 = vunpack.c.l.b16 %v16
  %v123 = vunpack.c.h.b16 %v16
  %v124 = vunpack.c.l.b16 %v17
  %v125 = vunpack.c.h.b16 %v17
  %v126 = vunpack.c.l.b16 %v18
  %v127 = vunpack.c.h.b16 %v18
  %v128 = vunpack.c.l.b16 %v19
  %v129 = vunpack.c.h.b16 %v19
  %v130 = vunpack.c.l.b16 %v20
  %v131 = vunpack.c.h.b16 %v20
  %v132 = vpack.c.b16 %v126, %v120
  %v133 = vpack.c.b16 %v127, %v121
  %v134 = vpack.c.b16 %v128, %v122
  %v135 = vpack.c.b16 %v129, %v123
  %v136 = vpack.c.b16 %v130, %v124
  %v137 = vpack.c.b16 %v131, %v125
  %v224 = vunpack.c.l.b16 %v21
  %v225 = vunpack.c.l.b16 %v22
  %v226 = vunpack.c.l.b16 %v23
  %v227 = vunpack.c.l.b16 %v24
  %v228 = vunpack.c.l.b16 %v25
  %v229 = vunpack.c.l.b16 %v26
  %v230 = vunpack.c.l.b16 %v27
  %v231 = vunpack.c.l.b16 %v28
  %v232 = vunpack.c.l.b16 %v29
  %v233 = vunpack.c.l.b16 %v30
  %v234 = vunpack.c.l.b16 %v31
  %v235 = vunpack.c.l.b16 %v32
  %v236 = vunpack.c.l.b16 %v33
  %v237 = vunpack.c.l.b16 %v34
  %v238 = vunpack.c.l.b16 %v35
  %v239 = vunpack.c.l.b16 %v36
  %v240 = vunpack.c.l.b16 %v37
  %v241 = vunpack.c.l.b16 %v38
  %v242 = vunpack.c.l.b16 %v39
  %v243 = vunpack.c.l.b16 %v40
  %v244 = vunpack.c.l.b16 %v41
  %v245 = vunpack.c.l.b16 %v42
  %v246 = vunpack.c.l.b16 %v43
  %v247 = vunpack.c.l.b16 %v44
  %v248 = vunpack.c.l.b16 %v45
  %v249 = vunpack.c.l.b16 %v46
  %v250 = vunpack.c.l.b16 %v47
  %v251 = vunpack.c.l.b16 %v48
  %v252 = vunpack.c.l.b16 %v49
  %v253 = vunpack.c.l.b16 %v50
  %v254 = vunpack.c.l.b16 %v51
  %v255 = vunpack.c.l.b16 %v52
  %v256 = vunpack.c.l.b16 %v53
  %v257 = vunpack.c.l.b16 %v54
  %v258 = vunpack.c.l.b16 %v55
  %v259 = vunpack.c.l.b16 %v56
  %v260 = vunpack.c.l.b16 %v57
  %v261 = vunpack.c.l.b16 %v58
  %v262 = vunpack.c.l.b16 %v59
  %v263 = vunpack.c.l.b16 %v60
  %v264 = vunpack.c.l.b16 %v61
  %v265 = vunpack.c.l.b16 %v62
  %v266 = vunpack.c.l.b16 %v63
  %v267 = vunpack.c.l.b16 %v64
  %v268 = vunpack.c.l.b16 %v65
  %v269 = vunpack.c.l.b16 %v66
  %v270 = vunpack.c.l.b16 %v67
  %v271 = vunpack.c.l.b16 %v68
  %v272 = vunpack.c.l.b16 %v69
  %v273 = vunpack.c.l.b16 %v70
  %v274 = vunpack.c.l.b16 %v71
  %v275 = vunpack.c.l.b16 %v72
  %v276 = vunpack.c.l.b16 %v73
  %v277 = vunpack.c.l.b16 %v74
  %v278 = vunpack.c.l.b16 %v75
  %v279 = vunpack.c.l.b16 %v76
  %v280 = vunpack.c.l.b16 %v77
  %v281 = vunpack.c.l.b16 %v78
  %v282 = vunpack.c.l.b16 %v79
  %v283 = vunpack.c.l.b16 %v80
  %v284 = vunpack.c.l.b16 %v81
  %v285 = vunpack.c.l.b16 %v82
  %v286 = vunpack.c.l.b16 %v83
  %v287 = vunpack.c.l.b16 %v84
  %v288 = vunpack.c.l.b16 %v85
  %v289 = vunpack.c.l.b16 %v86
  %v290 = vunpack.c.l.b16 %v87
  %v291 = vunpack.c.l.b16 %v88
  %v292 = vunpack.c.l.b16 %v89
  %v293 = vunpack.c.l.b16 %v90
  %v294 = vunpack.c.l.b16 %v91
  %v295 = vunpack.c.l.b16 %v92
  %v296 = vunpack.c.l.b16 %v93
  %v297 = vunpack.c.l.b16 %v94
  %v298 = vunpack.c.l.b16 %v95
  %v299 = vunpack.c.l.b16 %v96
  %v300 = vunpack.c.l.b16 %v97
  %v301 = vunpack.c.l.b16 %v98
  %v302 = vunpack.c.l.b16 %v99
  %v303 = vunpack.c.l.b16 %v100
  %v304 = vunpack.c.l.b16 %v101
  %v305 = vpack.c.b16 %v225, %v224
  %v306 = vpack.c.b16 %v227, %v226
  %v307 = vpack.c.b16 %v229, %v228
  %v308 = vpack.c.b16 %v231, %v230
  %v309 = vpack.c.b16 %v233, %v232
  %v310 = vpack.c.b16 %v235, %v234
  %v311 = vpack.c.b16 %v237, %v236
  %v312 = vpack.c.b16 %v239, %v238
  %v313 = vpack.c.b16 %v241, %v240
  %v314 = vpack.c.b16 %v243, %v242
  %v315 = vpack.c.b16 %v245, %v244
  %v316 = vpack.c.b16 %v247, %v246
  %v317 = vpack.c.b16 %v249, %v248
  %v318 = vpack.c.b16 %v251, %v250
  %v319 = vpack.c.b16 %v253, %v252
  %v320 = vpack.c.b16 %v255, %v254
  %v321 = vpack.c.b16 %v257, %v256
  %v322 = vpack.c.b16 %v259, %v258
  %v323 = vpack.c.b16 %v261, %v260
  %v324 = vpack.c.b16 %v263, %v262
  %v325 = vpack.c.b16 %v265, %v264
  %v326 = vpack.c.b16 %v267, %v266
  %v327 = vpack.c.b16 %v269, %v268
  %v328 = vpack.c.b16 %v271, %v270
  %v329 = vpack.c.b16 %v273, %v272
  %v330 = vpack.c.b16 %v275, %v274
  %v331 = vpack.c.b16 %v277, %v276
  %v332 = vpack.c.b16 %v279, %v278
  %v333 = vpack.c.b16 %v281, %v280
  %v334 = vpack.c.b16 %v283, %v282
  %v335 = vpack.c.b16 %v285, %v284
  %v336 = vpack.c.b16 %v287, %v286
  %v337 = vpack.c.b16 %v289, %v288
  %v338 = vpack.c.b16 %v291, %v290
  %v339 = vpack.c.b16 %v293, %v292
  %v340 = vpack.c.b16 %v295, %v294
  %v341 = vpack.c.b16 %v297, %v296
  %v342 = vpack.c.b16 %v299, %v298
  %v343 = vpack.c.b16 %v301, %v300
  %v344 = vpack.c.b16 %v303, %v302
  %v345 = vpack.c.b16 %v304, %v304
  %vm386 = vcmask 64512
  %v388 = vsel %vm386, %v137, 0
  %vm390 = vcmask 1043456
  %v392 = vsel %vm390, %v345, 0
  %394 = vmatprep.subr.bf16.mxu0 0
  %395 = vmatpush1.bf16.msra.mxu0 %v305
  %396 = vmatprep.subr.bf16.mxu0 0
  %397 = vmatpush1.bf16.msra.mxu0 %v306
  %398 = vmatprep.subr.bf16.mxu0 0
  %399 = vmatpush1.bf16.msra.mxu0 %v307
  %400 = vmatprep.subr.bf16.mxu0 0
  %401 = vmatpush1.bf16.msra.mxu0 %v308
  %402 = vmatprep.subr.bf16.mxu0 0
  %403 = vmatpush1.bf16.msra.mxu0 %v309
  %404 = vmatprep.subr.bf16.mxu0 0
  %405 = vmatpush1.bf16.msra.mxu0 %v310
  %406 = vmatprep.subr.bf16.mxu0 0
  %407 = vmatpush1.bf16.msra.mxu0 %v311
  %408 = vmatprep.subr.bf16.mxu0 0
  %409 = vmatpush1.bf16.msra.mxu0 %v312
  %410 = vmatprep.subr.bf16.mxu0 0
  %411 = vmatpush1.bf16.msra.mxu0 %v313
  %412 = vmatprep.subr.bf16.mxu0 0
  %413 = vmatpush1.bf16.msra.mxu0 %v314
  %414 = vmatprep.subr.bf16.mxu0 0
  %415 = vmatpush1.bf16.msra.mxu0 %v315
  %416 = vmatprep.subr.bf16.mxu0 0
  %417 = vmatpush1.bf16.msra.mxu0 %v316
  %418 = vmatprep.subr.bf16.mxu0 0
  %419 = vmatpush1.bf16.msra.mxu0 %v317
  %420 = vmatprep.subr.bf16.mxu0 0
  %421 = vmatpush1.bf16.msra.mxu0 %v318
  %422 = vmatprep.subr.bf16.mxu0 0
  %423 = vmatpush1.bf16.msra.mxu0 %v319
  %424 = vmatprep.subr.bf16.mxu0 0
  %425 = vmatpush1.bf16.msra.mxu0 %v320
  %426 = vmatprep.mubr.bf16.mxu0 %v133
  %427 = vmatmul.mubr.bf16.gmra.mrb[0].mxu0 %v132
  %v428 = vpop.f32.mrb[0].mxu0
  %v429 = vadd.f32 %v107, %v428
  %v430 = vpop.f32.mrb[0].mxu0
  %v431 = vpop.f32.mrb[0].mxu0
  %v432 = vadd.f32 %v112, %v431
  %v433 = vpop.f32.mrb[0].mxu0
  %434 = vdwg.mxu0
  %435 = vmatprep.subr.bf16.mxu0 0
  %436 = vmatpush1.bf16.msra.mxu0 %v321
  %437 = vmatprep.subr.bf16.mxu0 0
  %438 = vmatpush1.bf16.msra.mxu0 %v322
  %439 = vmatprep.subr.bf16.mxu0 0
  %440 = vmatpush1.bf16.msra.mxu0 %v323
  %441 = vmatprep.subr.bf16.mxu0 0
  %442 = vmatpush1.bf16.msra.mxu0 %v324
  %443 = vmatprep.subr.bf16.mxu0 0
  %444 = vmatpush1.bf16.msra.mxu0 %v325
  %445 = vmatprep.subr.bf16.mxu0 0
  %446 = vmatpush1.bf16.msra.mxu0 %v326
  %447 = vmatprep.subr.bf16.mxu0 0
  %448 = vmatpush1.bf16.msra.mxu0 %v327
  %449 = vmatprep.subr.bf16.mxu0 0
  %450 = vmatpush1.bf16.msra.mxu0 %v328
  %451 = vmatprep.subr.bf16.mxu0 0
  %452 = vmatpush1.bf16.msra.mxu0 %v329
  %453 = vmatprep.subr.bf16.mxu0 0
  %454 = vmatpush1.bf16.msra.mxu0 %v330
  %455 = vmatprep.subr.bf16.mxu0 0
  %456 = vmatpush1.bf16.msra.mxu0 %v331
  %457 = vmatprep.subr.bf16.mxu0 0
  %458 = vmatpush1.bf16.msra.mxu0 %v332
  %459 = vmatprep.subr.bf16.mxu0 0
  %460 = vmatpush1.bf16.msra.mxu0 %v333
  %461 = vmatprep.subr.bf16.mxu0 0
  %462 = vmatpush1.bf16.msra.mxu0 %v334
  %463 = vmatprep.subr.bf16.mxu0 0
  %464 = vmatpush1.bf16.msra.mxu0 %v335
  %465 = vmatprep.subr.bf16.mxu0 0
  %466 = vmatpush1.bf16.msra.mxu0 %v336
  %467 = vmatprep.mubr.bf16.mxu0 %v135
  %468 = vmatmul.mubr.bf16.gmra.mrb[0].mxu0 %v134
  %v469 = vpop.f32.mrb[0].mxu0
  %v470 = vadd.f32 %v429, %v469
  %v471 = vpop.f32.mrb[0].mxu0
  %v472 = vpop.f32.mrb[0].mxu0
  %v473 = vadd.f32 %v432, %v472
  %v474 = vpop.f32.mrb[0].mxu0
  %475 = vdwg.mxu0
  %476 = vmatprep.subr.bf16.mxu0 0
  %477 = vmatpush1.bf16.msra.mxu0 %v337
  %478 = vmatprep.subr.bf16.mxu0 0
  %479 = vmatpush1.bf16.msra.mxu0 %v338
  %480 = vmatprep.subr.bf16.mxu0 0
  %481 = vmatpush1.bf16.msra.mxu0 %v339
  %482 = vmatprep.subr.bf16.mxu0 0
  %483 = vmatpush1.bf16.msra.mxu0 %v340
  %484 = vmatprep.subr.bf16.mxu0 0
  %485 = vmatpush1.bf16.msra.mxu0 %v341
  %486 = vmatprep.subr.bf16.mxu0 0
  %487 = vmatpush1.bf16.msra.mxu0 %v342
  %488 = vmatprep.subr.bf16.mxu0 0
  %489 = vmatpush1.bf16.msra.mxu0 %v343
  %490 = vmatprep.subr.bf16.mxu0 0
  %491 = vmatpush1.bf16.msra.mxu0 %v344
  %492 = vmatprep.subr.bf16.mxu0 0
  %493 = vmatpush1.bf16.msra.mxu0 %v392
  %494 = vmatprep.subr.bf16.mxu0 0
  %495 = vmatpush1.bf16.msra.mxu0 0
  %496 = vmatprep.subr.bf16.mxu0 0
  %497 = vmatpush1.bf16.msra.mxu0 0
  %498 = vmatprep.subr.bf16.mxu0 0
  %499 = vmatpush1.bf16.msra.mxu0 0
  %500 = vmatprep.subr.bf16.mxu0 0
  %501 = vmatpush1.bf16.msra.mxu0 0
  %502 = vmatprep.subr.bf16.mxu0 0
  %503 = vmatpush1.bf16.msra.mxu0 0
  %504 = vmatprep.subr.bf16.mxu0 0
  %505 = vmatpush1.bf16.msra.mxu0 0
  %506 = vmatprep.subr.bf16.mxu0 0
  %507 = vmatpush1.bf16.msra.mxu0 0
  %508 = vmatprep.mubr.bf16.mxu0 %v388
  %509 = vmatmul.mubr.bf16.gmra.mrb[0].mxu0 %v136
  %v510 = vpop.f32.mrb[0].mxu0
  %v511 = vadd.f32 %v470, %v510
  %v512 = vpop.f32.mrb[0].mxu0
  %v513 = vpop.f32.mrb[0].mxu0
  %v514 = vadd.f32 %v473, %v513
  %v515 = vpop.f32.mrb[0].mxu0
  %516 = vdwg.mxu0
  %517 = vst [vmem:[%s3] sm:$0xff] %v511
  %518 = vst [vmem:[%s3 + $0x8] sm:$0xff] %v514
  // Predicated region
  $region14: #{downsample_with_dfs_forward.7} parent=0 // pred_check
    _
  $region15: #{downsample_with_dfs_forward.7} parent=0 // pred_check_branch
    %520 = sbr.rel (0) target = $region17
  $region16: #{downsample_with_dfs_forward.7} parent=0 // pred_region
    _
  $region17: #{downsample_with_dfs_forward.7} parent=0 // pred_fallthru
    _
  // Predicated region
  $region18: #{downsample_with_dfs_forward.7} parent=0 // pred_check
    _
  $region19: #{downsample_with_dfs_forward.7} parent=0 // pred_check_branch
    %522 = sbr.rel (0) target = $region21
  $region20: #{downsample_with_dfs_forward.7} parent=0 // pred_region
    _
  $region21: #{downsample_with_dfs_forward.7} parent=0 // pred_fallthru
    _

</llo_original>
